<compile_context>
chip_gen: v5e
topology: v5e:2x2
jax: 0.10.0
libtpu: 0.0.40
codegen_flags: <defaults>
</compile_context>

<pallas_src>
import functools

import jax
import jax.numpy as jnp
from jax.experimental import pallas as pl
from jax.experimental.pallas import tpu as pltpu


# TODO(synk): SpatialEncoding was not provided in the reference code; it is assumed
# to be Linear(d_in -> d_sp_enc) + sp_enc_activation with d_sp_enc == d_model.


def _round_up(x, m):
    return ((x + m - 1) // m) * m


def _cdiv(a, b):
    return (a + b - 1) // b


def _tpu_kind():
    try:
        return jax.devices()[0].device_kind.lower()
    except Exception:
        return ""


def _tpu_defaults(kind):
    # (block_q, vmem_limit_bytes) per generation (perf review).
    if "v7" in kind:                       # 64 MiB VMEM / TC, 2 TCs
        return 128, 48 * 1024 * 1024
    if "v6" in kind or "v5" in kind:       # 128 MiB VMEM, 1 TC
        return 256, 96 * 1024 * 1024
    return 128, None                       # unknown: conservative tile, default limit


def _choose_tile_q(sq, target, align):
    """Query tile: multiple of `align` (bf16 sublane packing), <= ~target, minimal pad."""
    target = max(align, (target // align) * align)
    n_tiles = _cdiv(sq, target)
    return _round_up(_cdiv(sq, n_tiles), align)


# --------------------------- kernel 1: projections ---------------------------
def _proj_kernel(q_ref, dist_ref,
                 wse_ref, bse_ref,
                 wq_ref, bq_ref, wk_ref, bk_ref, wv_ref, bv_ref,
                 qh_ref, kh_ref, vh_ref,
                 *, num_heads, activation, scale):
    qi = pl.program_id(1)

    # K/V depend only on the (Sk, d_in) distances: compute once per batch on the
    # first query tile; their output blocks (constant index over qi) stay resident.
    @pl.when(qi == 0)
    def _():
        se = jnp.dot(dist_ref[0], wse_ref[...],
                     preferred_element_type=jnp.float32) + bse_ref[...]
        if activation == "relu":
            se = jnp.maximum(se, 0.0)
        elif activation == "tanh":
            se = jnp.tanh(se)
        # TODO(synk): other sp_enc_activation choices not covered (identity otherwise).
        se = se.astype(kh_ref.dtype)
        for h in range(num_heads):
            kp = jnp.dot(se, wk_ref[h], preferred_element_type=jnp.float32) + bk_ref[h]
            kh_ref[0, h] = kp.astype(kh_ref.dtype)
            vp = jnp.dot(se, wv_ref[h], preferred_element_type=jnp.float32) + bv_ref[h]
            vh_ref[0, h] = vp.astype(vh_ref.dtype)

    # Q projection per query tile, per head; head indexed on the leading weight
    # axis (no sub-128-lane activation slicing). 1/sqrt(depth) folded in here.
    qx = q_ref[0]
    for h in range(num_heads):
        qp = jnp.dot(qx, wq_ref[h], preferred_element_type=jnp.float32) + bq_ref[h]
        qh_ref[0, h] = (qp * jnp.float32(scale)).astype(qh_ref.dtype)


# ------------------ kernel 2: attention + output projection ------------------
def _attn_kernel(*refs, num_heads, has_mask, return_attn, exact_softmax, compute_dtype):
    i = 0
    if has_mask:
        mask_ref = refs[i]; i += 1
    qh_ref, kh_ref, vh_ref, wo_ref, bo_ref = refs[i:i + 5]; i += 5
    out_ref = refs[i]; i += 1
    attn_ref = refs[i] if return_attn else None
    acc_ref = refs[-1]                       # (tile_q, d_model) f32 VMEM scratch
    cd = compute_dtype

    if has_mask:
        # -1e9 bias built once per tile (hoisted out of the head loop).
        mask_bias = mask_ref[0].astype(jnp.float32) * jnp.float32(-1e9)

    # Per-head loop (static unroll): bounds live temporaries to one head's
    # (tile_q, Sk) logits/probs instead of H of them.
    for h in range(num_heads):
        q_h = qh_ref[0, h]                   # (tq, depth), scale pre-folded
        k_h = kh_ref[0, h]                   # (Sk, depth)
        logits = jnp.einsum('qd,kd->qk', q_h, k_h,
                            preferred_element_type=jnp.float32)   # (tq, Sk) f32
        if has_mask:
            logits = logits + mask_bias

        m = jnp.max(logits, axis=-1, keepdims=True)
        p = jnp.exp(logits - m)
        denom = jnp.sum(p, axis=-1, keepdims=True)
        if exact_softmax:
            attn = p / denom
        else:
            attn = p * pl.reciprocal(denom, approx=True)          # EUP slot
        if return_attn:
            attn_ref[0, h] = attn.astype(attn_ref.dtype)

        ctx = jnp.dot(attn.astype(cd), vh_ref[0, h],
                      preferred_element_type=jnp.float32)         # (tq, depth)
        # Output projection folded per head; no (tq, d_model) concat materialized.
        # TODO(synk): when depth < 128, a single (tq,d_model)x(d_model,d_model)
        # matmul after one relayout may beat H K=depth matmuls — measure per gen.
        contrib = jnp.dot(ctx.astype(cd), wo_ref[h],
                          preferred_element_type=jnp.float32)     # (tq, d_model)
        if h == 0:
            acc_ref[...] = contrib
        else:
            acc_ref[...] += contrib

    out_ref[0] = (acc_ref[...] + bo_ref[...]).astype(out_ref.dtype)


# --------------------------------- wrapper -----------------------------------
def multi_head_attention(q, min_distance_matrix, params, *, num_heads, mask=None,
                         block_q=None, vmem_limit_bytes=None,
                         compute_dtype=jnp.bfloat16, attn_dtype=jnp.bfloat16,
                         out_dtype=None, return_attention_weights=True,
                         exact_softmax=False):
    """Pallas implementation of MultiHeadAttention.forward.

    Note: with exact_softmax=False (default) attention rows are normalized with an
    approximate EUP reciprocal (rows sum to 1 within ~1e-3 relative).
    """
    B, Sq, d_model = q.shape
    _, Sk, d_in = min_distance_matrix.shape
    assert d_model % num_heads == 0
    depth = d_model // num_heads
    activation = params["activation"]
    scale = float(depth) ** -0.5
    has_mask = mask is not None
    out_dtype = q.dtype if out_dtype is None else out_dtype

    kind = _tpu_kind()
    dflt_bq, dflt_vmem = _tpu_defaults(kind)
    if block_q is None:
        block_q = dflt_bq
    if vmem_limit_bytes is None:
        vmem_limit_bytes = dflt_vmem

    cd = jnp.dtype(compute_dtype)
    align = 16 if (cd.itemsize < 4 or jnp.dtype(attn_dtype).itemsize < 4) else 8
    tile_q = _choose_tile_q(Sq, block_q, align)
    sq_p = _round_up(Sq, tile_q)
    n_qt = sq_p // tile_q

    # Host-side prep: pad Sq to a tile multiple, cast activations/weights to the
    # MXU compute dtype, expose heads on the LEADING axis of Wq/Wk/Wv/Wo.
    q_in = q
    if sq_p != Sq:
        q_in = jnp.pad(q_in, ((0, 0), (0, sq_p - Sq), (0, 0)))
    q_in = q_in.astype(cd)
    dist_in = min_distance_matrix.astype(cd)

    def heads_w(w):    # (d_model, d_model) -> (H, d_model, depth)
        return jnp.transpose(w.reshape(d_model, num_heads, depth), (1, 0, 2)).astype(cd)

    def heads_b(b):    # (1, d_model) -> (H, 1, depth), kept f32 (added post-accum)
        return jnp.transpose(b.reshape(1, num_heads, depth), (1, 0, 2)).astype(jnp.float32)

    w_se = params["w_se"].astype(cd); b_se = params["b_se"].astype(jnp.float32)
    w_q = heads_w(params["w_q"]); b_q = heads_b(params["b_q"])
    w_k = heads_w(params["w_k"]); b_k = heads_b(params["b_k"])
    w_v = heads_w(params["w_v"]); b_v = heads_b(params["b_v"])
    w_o = params["w_o"].reshape(num_heads, depth, d_model).astype(cd)
    b_o = params["b_o"].astype(jnp.float32)

    const2 = lambda b, qi: (0, 0)
    const3 = lambda b, qi: (0, 0, 0)

    # ------------------ kernel 1: spatial encoding + Q/K/V ------------------
    proj = functools.partial(_proj_kernel, num_heads=num_heads,
                             activation=activation, scale=scale)
    qh, kh, vh = pl.pallas_call(
        proj,
        out_shape=(
            jax.ShapeDtypeStruct((B, num_heads, sq_p, depth), cd),
            jax.ShapeDtypeStruct((B, num_heads, Sk, depth), cd),
            jax.ShapeDtypeStruct((B, num_heads, Sk, depth), cd),
        ),
        grid_spec=pltpu.PrefetchScalarGridSpec(
            num_scalar_prefetch=0,
            grid=(B, n_qt),
            in_specs=[
                pl.BlockSpec((1, tile_q, d_model), lambda b, qi: (b, qi, 0)),  # q tile
                pl.BlockSpec((1, Sk, d_in), lambda b, qi: (b, 0, 0)),          # distances
                pl.BlockSpec(w_se.shape, const2),
                pl.BlockSpec(b_se.shape, const2),
                pl.BlockSpec(w_q.shape, const3),
                pl.BlockSpec(b_q.shape, const3),
                pl.BlockSpec(w_k.shape, const3),
                pl.BlockSpec(b_k.shape, const3),
                pl.BlockSpec(w_v.shape, const3),
                pl.BlockSpec(b_v.shape, const3),
            ],
            out_specs=[
                pl.BlockSpec((1, num_heads, tile_q, depth), lambda b, qi: (b, 0, qi, 0)),
                pl.BlockSpec((1, num_heads, Sk, depth), lambda b, qi: (b, 0, 0, 0)),
                pl.BlockSpec((1, num_heads, Sk, depth), lambda b, qi: (b, 0, 0, 0)),
            ],
        ),
        compiler_params=pltpu.CompilerParams(
            # K/V blocks are written only on the first query tile and kept
            # resident -> the qi axis must be "arbitrary" in this kernel.
            dimension_semantics=("parallel", "arbitrary"),
            vmem_limit_bytes=vmem_limit_bytes),
    )(q_in, dist_in, w_se, b_se, w_q, b_q, w_k, b_k, w_v, b_v)

    # ---------------- kernel 2: attention + output projection ----------------
    attn_kernel = functools.partial(
        _attn_kernel, num_heads=num_heads, has_mask=has_mask,
        return_attn=return_attention_weights, exact_softmax=exact_softmax,
        compute_dtype=cd)

    in_specs, inputs = [], []
    if has_mask:
        # Narrow-dtype mask (no f32 (B,Sq,Sk) materialization); bias built in-kernel.
        m3 = jnp.broadcast_to(mask, (B, Sq, Sk)).astype(cd)
        if sq_p != Sq:
            m3 = jnp.pad(m3, ((0, 0), (0, sq_p - Sq), (0, 0)))
        in_specs.append(pl.BlockSpec((1, tile_q, Sk), lambda b, qi: (b, qi, 0)))
        inputs.append(m3)
    in_specs += [
        pl.BlockSpec((1, num_heads, tile_q, depth), lambda b, qi: (b, 0, qi, 0)),  # qh tile
        pl.BlockSpec((1, num_heads, Sk, depth), lambda b, qi: (b, 0, 0, 0)),       # kh
        pl.BlockSpec((1, num_heads, Sk, depth), lambda b, qi: (b, 0, 0, 0)),       # vh
        pl.BlockSpec(w_o.shape, const3),
        pl.BlockSpec(b_o.shape, const2),
    ]
    inputs += [qh, kh, vh, w_o, b_o]

    out_shapes = [jax.ShapeDtypeStruct((B, sq_p, d_model), out_dtype)]
    out_specs = [pl.BlockSpec((1, tile_q, d_model), lambda b, qi: (b, qi, 0))]
    if return_attention_weights:
        out_shapes.append(jax.ShapeDtypeStruct((B, num_heads, sq_p, Sk), attn_dtype))
        out_specs.append(pl.BlockSpec((1, num_heads, tile_q, Sk),
                                      lambda b, qi: (b, 0, qi, 0)))

    sem2 = ("parallel", "parallel") if "v7" in kind else ("parallel", "arbitrary")

    results = pl.pallas_call(
        attn_kernel,
        out_shape=tuple(out_shapes),
        grid_spec=pltpu.PrefetchScalarGridSpec(
            num_scalar_prefetch=0,
            grid=(B, n_qt),
            in_specs=in_specs,
            out_specs=tuple(out_specs),
            scratch_shapes=[pltpu.VMEM((tile_q, d_model), jnp.float32)],
        ),
        compiler_params=pltpu.CompilerParams(
            dimension_semantics=sem2,
            vmem_limit_bytes=vmem_limit_bytes),
    )(*inputs)

    out = results[0][:, :Sq]
    attn = results[1][:, :, :Sq] if return_attention_weights else None
    return out, attn


# ------------------------------- reference -----------------------------------
def _reference(q, dist, params, *, num_heads, mask=None):
    """Pure-JAX reference mirroring the PyTorch forward (high-precision matmuls)."""
    with jax.default_matmul_precision("highest"):
        B, Sq, d_model = q.shape
        depth = d_model // num_heads
        se = dist @ params["w_se"] + params["b_se"]
        if params["activation"] == "relu":
            se = jnp.maximum(se, 0.0)
        elif params["activation"] == "tanh":
            se = jnp.tanh(se)
        qp = q @ params["w_q"] + params["b_q"]
        kp = se @ params["w_k"] + params["b_k"]
        vp = se @ params["w_v"] + params["b_v"]
        split = lambda x: x.reshape(B, -1, num_heads, depth).transpose(0, 2, 1, 3)
        qh, kh, vh = split(qp), split(kp), split(vp)
        logits = jnp.einsum("bhqd,bhkd->bhqk", qh, kh) * (depth ** -0.5)
        if mask is not None:
            logits = logits + mask[:, None, :, :] * (-1e9)
        attn = jax.nn.softmax(logits, axis=-1)
        ctx = jnp.einsum("bhqk,bhkd->bhqd", attn, vh)
        ctx = ctx.transpose(0, 2, 1, 3).reshape(B, Sq, d_model)
        out = ctx @ params["w_o"] + params["b_o"]
        return out, attn


def init_params(key, d_model, d_sp_enc, d_in, activation="relu"):
    assert d_sp_enc == d_model, "spatial encoding output must match d_model"
    ks = jax.random.split(key, 10)
    n = lambda k, shape, s: (s * jax.random.normal(k, shape)).astype(jnp.float32)
    return {
        "activation": activation,
        # weights stored (in, out); biases as (1, out) rows (same math as nn.Linear)
        "w_se": n(ks[0], (d_in, d_sp_enc), 0.2),   "b_se": n(ks[1], (1, d_sp_enc), 0.1),
        "w_q":  n(ks[2], (d_model, d_model), 0.1), "b_q":  n(ks[3], (1, d_model), 0.1),
        "w_k":  n(ks[4], (d_model, d_model), 0.1), "b_k":  n(ks[5], (1, d_model), 0.1),
        "w_v":  n(ks[6], (d_model, d_model), 0.1), "b_v":  n(ks[7], (1, d_model), 0.1),
        "w_o":  n(ks[8], (d_model, d_model), 0.1), "b_o":  n(ks[9], (1, d_model), 0.1),
    }


if __name__ == "__main__":
    B, Sq, Sk = 2, 8, 8
    d_model, num_heads = 32, 4
    d_in = Sk  # min_distance_matrix: (B, Sk, Sk) pairwise distances

    key = jax.random.PRNGKey(0)
    kq, kd, kp, km, kq2, km2 = jax.random.split(key, 6)
    q = jax.random.normal(kq, (B, Sq, d_model), jnp.float32)
    dist = jnp.abs(jax.random.normal(kd, (B, Sk, d_in), jnp.float32))
    params = init_params(kp, d_model, d_model, d_in, activation="relu")
    mask = (jax.random.uniform(km, (B, Sq, Sk)) > 0.7).astype(jnp.float32)

    ref_out, ref_attn = _reference(q, dist, params, num_heads=num_heads)
    ref_out_m, ref_attn_m = _reference(q, dist, params, num_heads=num_heads, mask=mask)

    # 1) default fast path: bf16 MXU operands + bf16 attention-weight writeback
    out, attn = multi_head_attention(q, dist, params, num_heads=num_heads)
    jax.block_until_ready((out, attn))
    assert out.shape == (B, Sq, d_model) and attn.shape == (B, num_heads, Sq, Sk)
    assert jnp.allclose(out, ref_out, atol=8e-2, rtol=8e-2)
    assert jnp.allclose(attn.astype(jnp.float32), ref_attn, atol=3e-2, rtol=3e-2)

    # 2) strict f32 path with mask + exact softmax normalization
    out_m, attn_m = multi_head_attention(
        q, dist, params, num_heads=num_heads, mask=mask,
        compute_dtype=jnp.float32, attn_dtype=jnp.float32, exact_softmax=True)
    jax.block_until_ready((out_m, attn_m))
    assert jnp.allclose(out_m, ref_out_m, atol=5e-3, rtol=5e-3)
    assert jnp.allclose(attn_m, ref_attn_m, atol=5e-3, rtol=5e-3)

    # 3) masked bf16 path that skips the (B,H,Sq,Sk) attention-weight writeback
    out_nw, attn_nw = multi_head_attention(
        q, dist, params, num_heads=num_heads, mask=mask,
        return_attention_weights=False)
    jax.block_until_ready(out_nw)
    assert attn_nw is None
    assert jnp.allclose(out_nw, ref_out_m, atol=8e-2, rtol=8e-2)

    # 4) multi-query-tile path (exercises Sq padding + resident write-once K/V)
    Sq2 = 24
    q2 = jax.random.normal(kq2, (B, Sq2, d_model), jnp.float32)
    mask2 = (jax.random.uniform(km2, (B, Sq2, Sk)) > 0.7).astype(jnp.float32)
    ref_out2, ref_attn2 = _reference(q2, dist, params, num_heads=num_heads, mask=mask2)
    out2, attn2 = multi_head_attention(
        q2, dist, params, num_heads=num_heads, mask=mask2, block_q=8,
        compute_dtype=jnp.float32, attn_dtype=jnp.float32, exact_softmax=True)
    jax.block_until_ready((out2, attn2))
    assert jnp.allclose(out2, ref_out2, atol=5e-3, rtol=5e-3)
    assert jnp.allclose(attn2, ref_attn2, atol=5e-3, rtol=5e-3)

    print("KERNEL_OK")
</pallas_src>

<mosaic_0001>
module attributes {stable_mosaic.version = 11 : i64} {
  func.func @_proj_kernel(%arg0: i32, %arg1: i32, %arg2: memref<1x16x32xbf16, #tpu.memory_space<vmem>>, %arg3: memref<1x8x8xbf16, #tpu.memory_space<vmem>>, %arg4: memref<8x32xbf16, #tpu.memory_space<vmem>>, %arg5: memref<1x32xf32, #tpu.memory_space<vmem>>, %arg6: memref<4x32x8xbf16, #tpu.memory_space<vmem>>, %arg7: memref<4x1x8xf32, #tpu.memory_space<vmem>>, %arg8: memref<4x32x8xbf16, #tpu.memory_space<vmem>>, %arg9: memref<4x1x8xf32, #tpu.memory_space<vmem>>, %arg10: memref<4x32x8xbf16, #tpu.memory_space<vmem>>, %arg11: memref<4x1x8xf32, #tpu.memory_space<vmem>>, %arg12: memref<1x4x16x8xbf16, #tpu.memory_space<vmem>>, %arg13: memref<1x4x8x8xbf16, #tpu.memory_space<vmem>>, %arg14: memref<1x4x8x8xbf16, #tpu.memory_space<vmem>>) attributes {dimension_semantics = [#tpu.dimension_semantics<parallel>, #tpu.dimension_semantics<arbitrary>], iteration_bounds = array<i64: 2, 1>, scalar_prefetch = 0 : i64, scratch_operands = 0 : i64, tpu.core_type = #tpu.core_type<tc>, window_params = [{transform_indices = @transform_0, window_bounds = array<i64: 1, 16, 32>}, {transform_indices = @transform_1, window_bounds = array<i64: 1, 8, 8>}, {pipeline_mode = #tpu.pipeline_mode<synchronous>, transform_indices = @transform_2, window_bounds = array<i64: 8, 32>}, {pipeline_mode = #tpu.pipeline_mode<synchronous>, transform_indices = @transform_3, window_bounds = array<i64: 1, 32>}, {pipeline_mode = #tpu.pipeline_mode<synchronous>, transform_indices = @transform_4, window_bounds = array<i64: 4, 32, 8>}, {pipeline_mode = #tpu.pipeline_mode<synchronous>, transform_indices = @transform_5, window_bounds = array<i64: 4, 1, 8>}, {pipeline_mode = #tpu.pipeline_mode<synchronous>, transform_indices = @transform_6, window_bounds = array<i64: 4, 32, 8>}, {pipeline_mode = #tpu.pipeline_mode<synchronous>, transform_indices = @transform_7, window_bounds = array<i64: 4, 1, 8>}, {pipeline_mode = #tpu.pipeline_mode<synchronous>, transform_indices = @transform_8, window_bounds = array<i64: 4, 32, 8>}, {pipeline_mode = #tpu.pipeline_mode<synchronous>, transform_indices = @transform_9, window_bounds = array<i64: 4, 1, 8>}, {transform_indices = @transform_10, window_bounds = array<i64: 1, 4, 16, 8>}, {transform_indices = @transform_11, window_bounds = array<i64: 1, 4, 8, 8>}, {transform_indices = @transform_12, window_bounds = array<i64: 1, 4, 8, 8>}]} {
    %c0_i32 = arith.constant 0 : i32
    %0 = arith.cmpi eq, %arg1, %c0_i32 : i32
    %1 = arith.extui %0 : i1 to i32
    %c0_i32_0 = arith.constant 0 : i32
    %2 = arith.cmpi ne, %1, %c0_i32_0 : i32
    scf.if %2 {
      %c0_47 = arith.constant 0 : index
      %c0_48 = arith.constant 0 : index
      %c0_49 = arith.constant 0 : index
      %57 = vector.load %arg3[%c0_47, %c0_48, %c0_49] : memref<1x8x8xbf16, #tpu.memory_space<vmem>>, vector<1x8x8xbf16>
      %58 = vector.shape_cast %57 : vector<1x8x8xbf16> to vector<8x8xbf16>
      %c0_50 = arith.constant 0 : index
      %c0_51 = arith.constant 0 : index
      %59 = vector.load %arg4[%c0_50, %c0_51] : memref<8x32xbf16, #tpu.memory_space<vmem>>, vector<8x32xbf16>
      %cst_52 = arith.constant dense<0.000000e+00> : vector<8x32xf32>
      %60 = tpu.matmul %58, %59, %cst_52 {dimension_numbers = #tpu.dot_dimension_numbers<[1], [0], [0], [1], [0, 0, 1, 1], [], []>} : vector<8x8xbf16>, vector<8x32xbf16>, vector<8x32xf32> -> vector<8x32xf32>
      %c0_53 = arith.constant 0 : index
      %c0_54 = arith.constant 0 : index
      %61 = vector.load %arg5[%c0_53, %c0_54] : memref<1x32xf32, #tpu.memory_space<vmem>>, vector<1x32xf32>
      %62 = vector.broadcast %61 : vector<1x32xf32> to vector<8x32xf32>
      %63 = arith.addf %60, %62 : vector<8x32xf32>
      %cst_55 = arith.constant 0.000000e+00 : f32
      %64 = vector.broadcast %cst_55 : f32 to vector<8x32xf32>
      %65 = arith.maximumf %63, %64 : vector<8x32xf32>
      %66 = arith.truncf %65 : vector<8x32xf32> to vector<8x32xbf16>
      %c0_56 = arith.constant 0 : index
      %c0_57 = arith.constant 0 : index
      %c0_58 = arith.constant 0 : index
      %67 = vector.load %arg8[%c0_56, %c0_57, %c0_58] : memref<4x32x8xbf16, #tpu.memory_space<vmem>>, vector<1x32x8xbf16>
      %68 = vector.shape_cast %67 : vector<1x32x8xbf16> to vector<32x8xbf16>
      %cst_59 = arith.constant dense<0.000000e+00> : vector<8x8xf32>
      %69 = tpu.matmul %66, %68, %cst_59 {dimension_numbers = #tpu.dot_dimension_numbers<[1], [0], [0], [1], [0, 0, 1, 1], [], []>} : vector<8x32xbf16>, vector<32x8xbf16>, vector<8x8xf32> -> vector<8x8xf32>
      %c0_60 = arith.constant 0 : index
      %c0_61 = arith.constant 0 : index
      %c0_62 = arith.constant 0 : index
      %70 = vector.load %arg9[%c0_60, %c0_61, %c0_62] : memref<4x1x8xf32, #tpu.memory_space<vmem>>, vector<1x1x8xf32>
      %71 = vector.shape_cast %70 : vector<1x1x8xf32> to vector<1x8xf32>
      %72 = vector.broadcast %71 : vector<1x8xf32> to vector<8x8xf32>
      %73 = arith.addf %69, %72 : vector<8x8xf32>
      %74 = arith.truncf %73 : vector<8x8xf32> to vector<8x8xbf16>
      %c0_63 = arith.constant 0 : index
      %c0_64 = arith.constant 0 : index
      %c0_65 = arith.constant 0 : index
      %c0_66 = arith.constant 0 : index
      %75 = vector.load %arg13[%c0_63, %c0_64, %c0_65, %c0_66] : memref<1x4x8x8xbf16, #tpu.memory_space<vmem>>, vector<1x1x8x8xbf16>
      %76 = vector.shape_cast %75 : vector<1x1x8x8xbf16> to vector<8x8xbf16>
      %77 = vector.shape_cast %74 : vector<8x8xbf16> to vector<1x1x8x8xbf16>
      tpu.vector_store %arg13[%c0_63, %c0_64, %c0_65, %c0_66], %77 {strides = array<i32>} : memref<1x4x8x8xbf16, #tpu.memory_space<vmem>>, vector<1x1x8x8xbf16>,
      %c0_67 = arith.constant 0 : index
      %c0_68 = arith.constant 0 : index
      %c0_69 = arith.constant 0 : index
      %78 = vector.load %arg10[%c0_67, %c0_68, %c0_69] : memref<4x32x8xbf16, #tpu.memory_space<vmem>>, vector<1x32x8xbf16>
      %79 = vector.shape_cast %78 : vector<1x32x8xbf16> to vector<32x8xbf16>
      %cst_70 = arith.constant dense<0.000000e+00> : vector<8x8xf32>
      %80 = tpu.matmul %66, %79, %cst_70 {dimension_numbers = #tpu.dot_dimension_numbers<[1], [0], [0], [1], [0, 0, 1, 1], [], []>} : vector<8x32xbf16>, vector<32x8xbf16>, vector<8x8xf32> -> vector<8x8xf32>
      %c0_71 = arith.constant 0 : index
      %c0_72 = arith.constant 0 : index
      %c0_73 = arith.constant 0 : index
      %81 = vector.load %arg11[%c0_71, %c0_72, %c0_73] : memref<4x1x8xf32, #tpu.memory_space<vmem>>, vector<1x1x8xf32>
      %82 = vector.shape_cast %81 : vector<1x1x8xf32> to vector<1x8xf32>
      %83 = vector.broadcast %82 : vector<1x8xf32> to vector<8x8xf32>
      %84 = arith.addf %80, %83 : vector<8x8xf32>
      %85 = arith.truncf %84 : vector<8x8xf32> to vector<8x8xbf16>
      %c0_74 = arith.constant 0 : index
      %c0_75 = arith.constant 0 : index
      %c0_76 = arith.constant 0 : index
      %c0_77 = arith.constant 0 : index
      %86 = vector.load %arg14[%c0_74, %c0_75, %c0_76, %c0_77] : memref<1x4x8x8xbf16, #tpu.memory_space<vmem>>, vector<1x1x8x8xbf16>
      %87 = vector.shape_cast %86 : vector<1x1x8x8xbf16> to vector<8x8xbf16>
      %88 = vector.shape_cast %85 : vector<8x8xbf16> to vector<1x1x8x8xbf16>
      tpu.vector_store %arg14[%c0_74, %c0_75, %c0_76, %c0_77], %88 {strides = array<i32>} : memref<1x4x8x8xbf16, #tpu.memory_space<vmem>>, vector<1x1x8x8xbf16>,
      %c1_78 = arith.constant 1 : index
      %c0_79 = arith.constant 0 : index
      %c0_80 = arith.constant 0 : index
      %89 = vector.load %arg8[%c1_78, %c0_79, %c0_80] : memref<4x32x8xbf16, #tpu.memory_space<vmem>>, vector<1x32x8xbf16>
      %90 = vector.shape_cast %89 : vector<1x32x8xbf16> to vector<32x8xbf16>
      %cst_81 = arith.constant dense<0.000000e+00> : vector<8x8xf32>
      %91 = tpu.matmul %66, %90, %cst_81 {dimension_numbers = #tpu.dot_dimension_numbers<[1], [0], [0], [1], [0, 0, 1, 1], [], []>} : vector<8x32xbf16>, vector<32x8xbf16>, vector<8x8xf32> -> vector<8x8xf32>
      %c1_82 = arith.constant 1 : index
      %c0_83 = arith.constant 0 : index
      %c0_84 = arith.constant 0 : index
      %92 = vector.load %arg9[%c1_82, %c0_83, %c0_84] : memref<4x1x8xf32, #tpu.memory_space<vmem>>, vector<1x1x8xf32>
      %93 = vector.shape_cast %92 : vector<1x1x8xf32> to vector<1x8xf32>
      %94 = vector.broadcast %93 : vector<1x8xf32> to vector<8x8xf32>
      %95 = arith.addf %91, %94 : vector<8x8xf32>
      %96 = arith.truncf %95 : vector<8x8xf32> to vector<8x8xbf16>
      %c0_85 = arith.constant 0 : index
      %c1_86 = arith.constant 1 : index
      %c0_87 = arith.constant 0 : index
      %c0_88 = arith.constant 0 : index
      %97 = vector.load %arg13[%c0_85, %c1_86, %c0_87, %c0_88] : memref<1x4x8x8xbf16, #tpu.memory_space<vmem>>, vector<1x1x8x8xbf16>
      %98 = vector.shape_cast %97 : vector<1x1x8x8xbf16> to vector<8x8xbf16>
      %99 = vector.shape_cast %96 : vector<8x8xbf16> to vector<1x1x8x8xbf16>
      tpu.vector_store %arg13[%c0_85, %c1_86, %c0_87, %c0_88], %99 {strides = array<i32>} : memref<1x4x8x8xbf16, #tpu.memory_space<vmem>>, vector<1x1x8x8xbf16>,
      %c1_89 = arith.constant 1 : index
      %c0_90 = arith.constant 0 : index
      %c0_91 = arith.constant 0 : index
      %100 = vector.load %arg10[%c1_89, %c0_90, %c0_91] : memref<4x32x8xbf16, #tpu.memory_space<vmem>>, vector<1x32x8xbf16>
      %101 = vector.shape_cast %100 : vector<1x32x8xbf16> to vector<32x8xbf16>
      %cst_92 = arith.constant dense<0.000000e+00> : vector<8x8xf32>
      %102 = tpu.matmul %66, %101, %cst_92 {dimension_numbers = #tpu.dot_dimension_numbers<[1], [0], [0], [1], [0, 0, 1, 1], [], []>} : vector<8x32xbf16>, vector<32x8xbf16>, vector<8x8xf32> -> vector<8x8xf32>
      %c1_93 = arith.constant 1 : index
      %c0_94 = arith.constant 0 : index
      %c0_95 = arith.constant 0 : index
      %103 = vector.load %arg11[%c1_93, %c0_94, %c0_95] : memref<4x1x8xf32, #tpu.memory_space<vmem>>, vector<1x1x8xf32>
      %104 = vector.shape_cast %103 : vector<1x1x8xf32> to vector<1x8xf32>
      %105 = vector.broadcast %104 : vector<1x8xf32> to vector<8x8xf32>
      %106 = arith.addf %102, %105 : vector<8x8xf32>
      %107 = arith.truncf %106 : vector<8x8xf32> to vector<8x8xbf16>
      %c0_96 = arith.constant 0 : index
      %c1_97 = arith.constant 1 : index
      %c0_98 = arith.constant 0 : index
      %c0_99 = arith.constant 0 : index
      %108 = vector.load %arg14[%c0_96, %c1_97, %c0_98, %c0_99] : memref<1x4x8x8xbf16, #tpu.memory_space<vmem>>, vector<1x1x8x8xbf16>
      %109 = vector.shape_cast %108 : vector<1x1x8x8xbf16> to vector<8x8xbf16>
      %110 = vector.shape_cast %107 : vector<8x8xbf16> to vector<1x1x8x8xbf16>
      tpu.vector_store %arg14[%c0_96, %c1_97, %c0_98, %c0_99], %110 {strides = array<i32>} : memref<1x4x8x8xbf16, #tpu.memory_space<vmem>>, vector<1x1x8x8xbf16>,
      %c2_100 = arith.constant 2 : index
      %c0_101 = arith.constant 0 : index
      %c0_102 = arith.constant 0 : index
      %111 = vector.load %arg8[%c2_100, %c0_101, %c0_102] : memref<4x32x8xbf16, #tpu.memory_space<vmem>>, vector<1x32x8xbf16>
      %112 = vector.shape_cast %111 : vector<1x32x8xbf16> to vector<32x8xbf16>
      %cst_103 = arith.constant dense<0.000000e+00> : vector<8x8xf32>
      %113 = tpu.matmul %66, %112, %cst_103 {dimension_numbers = #tpu.dot_dimension_numbers<[1], [0], [0], [1], [0, 0, 1, 1], [], []>} : vector<8x32xbf16>, vector<32x8xbf16>, vector<8x8xf32> -> vector<8x8xf32>
      %c2_104 = arith.constant 2 : index
      %c0_105 = arith.constant 0 : index
      %c0_106 = arith.constant 0 : index
      %114 = vector.load %arg9[%c2_104, %c0_105, %c0_106] : memref<4x1x8xf32, #tpu.memory_space<vmem>>, vector<1x1x8xf32>
      %115 = vector.shape_cast %114 : vector<1x1x8xf32> to vector<1x8xf32>
      %116 = vector.broadcast %115 : vector<1x8xf32> to vector<8x8xf32>
      %117 = arith.addf %113, %116 : vector<8x8xf32>
      %118 = arith.truncf %117 : vector<8x8xf32> to vector<8x8xbf16>
      %c0_107 = arith.constant 0 : index
      %c2_108 = arith.constant 2 : index
      %c0_109 = arith.constant 0 : index
      %c0_110 = arith.constant 0 : index
      %119 = vector.load %arg13[%c0_107, %c2_108, %c0_109, %c0_110] : memref<1x4x8x8xbf16, #tpu.memory_space<vmem>>, vector<1x1x8x8xbf16>
      %120 = vector.shape_cast %119 : vector<1x1x8x8xbf16> to vector<8x8xbf16>
      %121 = vector.shape_cast %118 : vector<8x8xbf16> to vector<1x1x8x8xbf16>
      tpu.vector_store %arg13[%c0_107, %c2_108, %c0_109, %c0_110], %121 {strides = array<i32>} : memref<1x4x8x8xbf16, #tpu.memory_space<vmem>>, vector<1x1x8x8xbf16>,
      %c2_111 = arith.constant 2 : index
      %c0_112 = arith.constant 0 : index
      %c0_113 = arith.constant 0 : index
      %122 = vector.load %arg10[%c2_111, %c0_112, %c0_113] : memref<4x32x8xbf16, #tpu.memory_space<vmem>>, vector<1x32x8xbf16>
      %123 = vector.shape_cast %122 : vector<1x32x8xbf16> to vector<32x8xbf16>
      %cst_114 = arith.constant dense<0.000000e+00> : vector<8x8xf32>
      %124 = tpu.matmul %66, %123, %cst_114 {dimension_numbers = #tpu.dot_dimension_numbers<[1], [0], [0], [1], [0, 0, 1, 1], [], []>} : vector<8x32xbf16>, vector<32x8xbf16>, vector<8x8xf32> -> vector<8x8xf32>
      %c2_115 = arith.constant 2 : index
      %c0_116 = arith.constant 0 : index
      %c0_117 = arith.constant 0 : index
      %125 = vector.load %arg11[%c2_115, %c0_116, %c0_117] : memref<4x1x8xf32, #tpu.memory_space<vmem>>, vector<1x1x8xf32>
      %126 = vector.shape_cast %125 : vector<1x1x8xf32> to vector<1x8xf32>
      %127 = vector.broadcast %126 : vector<1x8xf32> to vector<8x8xf32>
      %128 = arith.addf %124, %127 : vector<8x8xf32>
      %129 = arith.truncf %128 : vector<8x8xf32> to vector<8x8xbf16>
      %c0_118 = arith.constant 0 : index
      %c2_119 = arith.constant 2 : index
      %c0_120 = arith.constant 0 : index
      %c0_121 = arith.constant 0 : index
      %130 = vector.load %arg14[%c0_118, %c2_119, %c0_120, %c0_121] : memref<1x4x8x8xbf16, #tpu.memory_space<vmem>>, vector<1x1x8x8xbf16>
      %131 = vector.shape_cast %130 : vector<1x1x8x8xbf16> to vector<8x8xbf16>
      %132 = vector.shape_cast %129 : vector<8x8xbf16> to vector<1x1x8x8xbf16>
      tpu.vector_store %arg14[%c0_118, %c2_119, %c0_120, %c0_121], %132 {strides = array<i32>} : memref<1x4x8x8xbf16, #tpu.memory_space<vmem>>, vector<1x1x8x8xbf16>,
      %c3_122 = arith.constant 3 : index
      %c0_123 = arith.constant 0 : index
      %c0_124 = arith.constant 0 : index
      %133 = vector.load %arg8[%c3_122, %c0_123, %c0_124] : memref<4x32x8xbf16, #tpu.memory_space<vmem>>, vector<1x32x8xbf16>
      %134 = vector.shape_cast %133 : vector<1x32x8xbf16> to vector<32x8xbf16>
      %cst_125 = arith.constant dense<0.000000e+00> : vector<8x8xf32>
      %135 = tpu.matmul %66, %134, %cst_125 {dimension_numbers = #tpu.dot_dimension_numbers<[1], [0], [0], [1], [0, 0, 1, 1], [], []>} : vector<8x32xbf16>, vector<32x8xbf16>, vector<8x8xf32> -> vector<8x8xf32>
      %c3_126 = arith.constant 3 : index
      %c0_127 = arith.constant 0 : index
      %c0_128 = arith.constant 0 : index
      %136 = vector.load %arg9[%c3_126, %c0_127, %c0_128] : memref<4x1x8xf32, #tpu.memory_space<vmem>>, vector<1x1x8xf32>
      %137 = vector.shape_cast %136 : vector<1x1x8xf32> to vector<1x8xf32>
      %138 = vector.broadcast %137 : vector<1x8xf32> to vector<8x8xf32>
      %139 = arith.addf %135, %138 : vector<8x8xf32>
      %140 = arith.truncf %139 : vector<8x8xf32> to vector<8x8xbf16>
      %c0_129 = arith.constant 0 : index
      %c3_130 = arith.constant 3 : index
      %c0_131 = arith.constant 0 : index
      %c0_132 = arith.constant 0 : index
      %141 = vector.load %arg13[%c0_129, %c3_130, %c0_131, %c0_132] : memref<1x4x8x8xbf16, #tpu.memory_space<vmem>>, vector<1x1x8x8xbf16>
      %142 = vector.shape_cast %141 : vector<1x1x8x8xbf16> to vector<8x8xbf16>
      %143 = vector.shape_cast %140 : vector<8x8xbf16> to vector<1x1x8x8xbf16>
      tpu.vector_store %arg13[%c0_129, %c3_130, %c0_131, %c0_132], %143 {strides = array<i32>} : memref<1x4x8x8xbf16, #tpu.memory_space<vmem>>, vector<1x1x8x8xbf16>,
      %c3_133 = arith.constant 3 : index
      %c0_134 = arith.constant 0 : index
      %c0_135 = arith.constant 0 : index
      %144 = vector.load %arg10[%c3_133, %c0_134, %c0_135] : memref<4x32x8xbf16, #tpu.memory_space<vmem>>, vector<1x32x8xbf16>
      %145 = vector.shape_cast %144 : vector<1x32x8xbf16> to vector<32x8xbf16>
      %cst_136 = arith.constant dense<0.000000e+00> : vector<8x8xf32>
      %146 = tpu.matmul %66, %145, %cst_136 {dimension_numbers = #tpu.dot_dimension_numbers<[1], [0], [0], [1], [0, 0, 1, 1], [], []>} : vector<8x32xbf16>, vector<32x8xbf16>, vector<8x8xf32> -> vector<8x8xf32>
      %c3_137 = arith.constant 3 : index
      %c0_138 = arith.constant 0 : index
      %c0_139 = arith.constant 0 : index
      %147 = vector.load %arg11[%c3_137, %c0_138, %c0_139] : memref<4x1x8xf32, #tpu.memory_space<vmem>>, vector<1x1x8xf32>
      %148 = vector.shape_cast %147 : vector<1x1x8xf32> to vector<1x8xf32>
      %149 = vector.broadcast %148 : vector<1x8xf32> to vector<8x8xf32>
      %150 = arith.addf %146, %149 : vector<8x8xf32>
      %151 = arith.truncf %150 : vector<8x8xf32> to vector<8x8xbf16>
      %c0_140 = arith.constant 0 : index
      %c3_141 = arith.constant 3 : index
      %c0_142 = arith.constant 0 : index
      %c0_143 = arith.constant 0 : index
      %152 = vector.load %arg14[%c0_140, %c3_141, %c0_142, %c0_143] : memref<1x4x8x8xbf16, #tpu.memory_space<vmem>>, vector<1x1x8x8xbf16>
      %153 = vector.shape_cast %152 : vector<1x1x8x8xbf16> to vector<8x8xbf16>
      %154 = vector.shape_cast %151 : vector<8x8xbf16> to vector<1x1x8x8xbf16>
      tpu.vector_store %arg14[%c0_140, %c3_141, %c0_142, %c0_143], %154 {strides = array<i32>} : memref<1x4x8x8xbf16, #tpu.memory_space<vmem>>, vector<1x1x8x8xbf16>,
    } else {
    }
    %c0 = arith.constant 0 : index
    %c0_1 = arith.constant 0 : index
    %c0_2 = arith.constant 0 : index
    %3 = vector.load %arg2[%c0, %c0_1, %c0_2] : memref<1x16x32xbf16, #tpu.memory_space<vmem>>, vector<1x16x32xbf16>
    %4 = vector.shape_cast %3 : vector<1x16x32xbf16> to vector<16x32xbf16>
    %c0_3 = arith.constant 0 : index
    %c0_4 = arith.constant 0 : index
    %c0_5 = arith.constant 0 : index
    %5 = vector.load %arg6[%c0_3, %c0_4, %c0_5] : memref<4x32x8xbf16, #tpu.memory_space<vmem>>, vector<1x32x8xbf16>
    %6 = vector.shape_cast %5 : vector<1x32x8xbf16> to vector<32x8xbf16>
    %cst = arith.constant dense<0.000000e+00> : vector<16x8xf32>
    %7 = tpu.matmul %4, %6, %cst {dimension_numbers = #tpu.dot_dimension_numbers<[1], [0], [0], [1], [0, 0, 1, 1], [], []>} : vector<16x32xbf16>, vector<32x8xbf16>, vector<16x8xf32> -> vector<16x8xf32>
    %c0_6 = arith.constant 0 : index
    %c0_7 = arith.constant 0 : index
    %c0_8 = arith.constant 0 : index
    %8 = vector.load %arg7[%c0_6, %c0_7, %c0_8] : memref<4x1x8xf32, #tpu.memory_space<vmem>>, vector<1x1x8xf32>
    %9 = vector.shape_cast %8 : vector<1x1x8xf32> to vector<1x8xf32>
    %10 = vector.broadcast %9 : vector<1x8xf32> to vector<16x8xf32>
    %11 = arith.addf %7, %10 : vector<16x8xf32>
    %cst_9 = arith.constant 0.353553385 : f32
    %12 = vector.broadcast %cst_9 : f32 to vector<16x8xf32>
    %13 = arith.mulf %11, %12 : vector<16x8xf32>
    %14 = arith.truncf %13 : vector<16x8xf32> to vector<16x8xbf16>
    %c0_10 = arith.constant 0 : index
    %c0_11 = arith.constant 0 : index
    %c0_12 = arith.constant 0 : index
    %c0_13 = arith.constant 0 : index
    %15 = vector.load %arg12[%c0_10, %c0_11, %c0_12, %c0_13] : memref<1x4x16x8xbf16, #tpu.memory_space<vmem>>, vector<1x1x16x8xbf16>
    %16 = vector.shape_cast %15 : vector<1x1x16x8xbf16> to vector<16x8xbf16>
    %17 = vector.shape_cast %14 : vector<16x8xbf16> to vector<1x1x16x8xbf16>
    tpu.vector_store %arg12[%c0_10, %c0_11, %c0_12, %c0_13], %17 {strides = array<i32>} : memref<1x4x16x8xbf16, #tpu.memory_space<vmem>>, vector<1x1x16x8xbf16>,
    %c1 = arith.constant 1 : index
    %c0_14 = arith.constant 0 : index
    %c0_15 = arith.constant 0 : index
    %18 = vector.load %arg6[%c1, %c0_14, %c0_15] : memref<4x32x8xbf16, #tpu.memory_space<vmem>>, vector<1x32x8xbf16>
    %19 = vector.shape_cast %18 : vector<1x32x8xbf16> to vector<32x8xbf16>
    %cst_16 = arith.constant dense<0.000000e+00> : vector<16x8xf32>
    %20 = tpu.matmul %4, %19, %cst_16 {dimension_numbers = #tpu.dot_dimension_numbers<[1], [0], [0], [1], [0, 0, 1, 1], [], []>} : vector<16x32xbf16>, vector<32x8xbf16>, vector<16x8xf32> -> vector<16x8xf32>
    %c1_17 = arith.constant 1 : index
    %c0_18 = arith.constant 0 : index
    %c0_19 = arith.constant 0 : index
    %21 = vector.load %arg7[%c1_17, %c0_18, %c0_19] : memref<4x1x8xf32, #tpu.memory_space<vmem>>, vector<1x1x8xf32>
    %22 = vector.shape_cast %21 : vector<1x1x8xf32> to vector<1x8xf32>
    %23 = vector.broadcast %22 : vector<1x8xf32> to vector<16x8xf32>
    %24 = arith.addf %20, %23 : vector<16x8xf32>
    %cst_20 = arith.constant 0.353553385 : f32
    %25 = vector.broadcast %cst_20 : f32 to vector<16x8xf32>
    %26 = arith.mulf %24, %25 : vector<16x8xf32>
    %27 = arith.truncf %26 : vector<16x8xf32> to vector<16x8xbf16>
    %c0_21 = arith.constant 0 : index
    %c1_22 = arith.constant 1 : index
    %c0_23 = arith.constant 0 : index
    %c0_24 = arith.constant 0 : index
    %28 = vector.load %arg12[%c0_21, %c1_22, %c0_23, %c0_24] : memref<1x4x16x8xbf16, #tpu.memory_space<vmem>>, vector<1x1x16x8xbf16>
    %29 = vector.shape_cast %28 : vector<1x1x16x8xbf16> to vector<16x8xbf16>
    %30 = vector.shape_cast %27 : vector<16x8xbf16> to vector<1x1x16x8xbf16>
    tpu.vector_store %arg12[%c0_21, %c1_22, %c0_23, %c0_24], %30 {strides = array<i32>} : memref<1x4x16x8xbf16, #tpu.memory_space<vmem>>, vector<1x1x16x8xbf16>,
    %c2 = arith.constant 2 : index
    %c0_25 = arith.constant 0 : index
    %c0_26 = arith.constant 0 : index
    %31 = vector.load %arg6[%c2, %c0_25, %c0_26] : memref<4x32x8xbf16, #tpu.memory_space<vmem>>, vector<1x32x8xbf16>
    %32 = vector.shape_cast %31 : vector<1x32x8xbf16> to vector<32x8xbf16>
    %cst_27 = arith.constant dense<0.000000e+00> : vector<16x8xf32>
    %33 = tpu.matmul %4, %32, %cst_27 {dimension_numbers = #tpu.dot_dimension_numbers<[1], [0], [0], [1], [0, 0, 1, 1], [], []>} : vector<16x32xbf16>, vector<32x8xbf16>, vector<16x8xf32> -> vector<16x8xf32>
    %c2_28 = arith.constant 2 : index
    %c0_29 = arith.constant 0 : index
    %c0_30 = arith.constant 0 : index
    %34 = vector.load %arg7[%c2_28, %c0_29, %c0_30] : memref<4x1x8xf32, #tpu.memory_space<vmem>>, vector<1x1x8xf32>
    %35 = vector.shape_cast %34 : vector<1x1x8xf32> to vector<1x8xf32>
    %36 = vector.broadcast %35 : vector<1x8xf32> to vector<16x8xf32>
    %37 = arith.addf %33, %36 : vector<16x8xf32>
    %cst_31 = arith.constant 0.353553385 : f32
    %38 = vector.broadcast %cst_31 : f32 to vector<16x8xf32>
    %39 = arith.mulf %37, %38 : vector<16x8xf32>
    %40 = arith.truncf %39 : vector<16x8xf32> to vector<16x8xbf16>
    %c0_32 = arith.constant 0 : index
    %c2_33 = arith.constant 2 : index
    %c0_34 = arith.constant 0 : index
    %c0_35 = arith.constant 0 : index
    %41 = vector.load %arg12[%c0_32, %c2_33, %c0_34, %c0_35] : memref<1x4x16x8xbf16, #tpu.memory_space<vmem>>, vector<1x1x16x8xbf16>
    %42 = vector.shape_cast %41 : vector<1x1x16x8xbf16> to vector<16x8xbf16>
    %43 = vector.shape_cast %40 : vector<16x8xbf16> to vector<1x1x16x8xbf16>
    tpu.vector_store %arg12[%c0_32, %c2_33, %c0_34, %c0_35], %43 {strides = array<i32>} : memref<1x4x16x8xbf16, #tpu.memory_space<vmem>>, vector<1x1x16x8xbf16>,
    %c3 = arith.constant 3 : index
    %c0_36 = arith.constant 0 : index
    %c0_37 = arith.constant 0 : index
    %44 = vector.load %arg6[%c3, %c0_36, %c0_37] : memref<4x32x8xbf16, #tpu.memory_space<vmem>>, vector<1x32x8xbf16>
    %45 = vector.shape_cast %44 : vector<1x32x8xbf16> to vector<32x8xbf16>
    %cst_38 = arith.constant dense<0.000000e+00> : vector<16x8xf32>
    %46 = tpu.matmul %4, %45, %cst_38 {dimension_numbers = #tpu.dot_dimension_numbers<[1], [0], [0], [1], [0, 0, 1, 1], [], []>} : vector<16x32xbf16>, vector<32x8xbf16>, vector<16x8xf32> -> vector<16x8xf32>
    %c3_39 = arith.constant 3 : index
    %c0_40 = arith.constant 0 : index
    %c0_41 = arith.constant 0 : index
    %47 = vector.load %arg7[%c3_39, %c0_40, %c0_41] : memref<4x1x8xf32, #tpu.memory_space<vmem>>, vector<1x1x8xf32>
    %48 = vector.shape_cast %47 : vector<1x1x8xf32> to vector<1x8xf32>
    %49 = vector.broadcast %48 : vector<1x8xf32> to vector<16x8xf32>
    %50 = arith.addf %46, %49 : vector<16x8xf32>
    %cst_42 = arith.constant 0.353553385 : f32
    %51 = vector.broadcast %cst_42 : f32 to vector<16x8xf32>
    %52 = arith.mulf %50, %51 : vector<16x8xf32>
    %53 = arith.truncf %52 : vector<16x8xf32> to vector<16x8xbf16>
    %c0_43 = arith.constant 0 : index
    %c3_44 = arith.constant 3 : index
    %c0_45 = arith.constant 0 : index
    %c0_46 = arith.constant 0 : index
    %54 = vector.load %arg12[%c0_43, %c3_44, %c0_45, %c0_46] : memref<1x4x16x8xbf16, #tpu.memory_space<vmem>>, vector<1x1x16x8xbf16>
    %55 = vector.shape_cast %54 : vector<1x1x16x8xbf16> to vector<16x8xbf16>
    %56 = vector.shape_cast %53 : vector<16x8xbf16> to vector<1x1x16x8xbf16>
    tpu.vector_store %arg12[%c0_43, %c3_44, %c0_45, %c0_46], %56 {strides = array<i32>} : memref<1x4x16x8xbf16, #tpu.memory_space<vmem>>, vector<1x1x16x8xbf16>,
    return
  }
  func.func @transform_0(%arg0: i32, %arg1: i32) -> (i32, i32, i32) {
    %c0_i32 = arith.constant 0 : i32
    %c0_i32_0 = arith.constant 0 : i32
    return %arg0, %arg1, %c0_i32 : i32, i32, i32
  }
  func.func @transform_1(%arg0: i32, %arg1: i32) -> (i32, i32, i32) {
    %c0_i32 = arith.constant 0 : i32
    %c0_i32_0 = arith.constant 0 : i32
    %c0_i32_1 = arith.constant 0 : i32
    return %arg0, %c0_i32, %c0_i32_0 : i32, i32, i32
  }
  func.func @transform_2(%arg0: i32, %arg1: i32) -> (i32, i32) {
    %c0_i32 = arith.constant 0 : i32
    %c0_i32_0 = arith.constant 0 : i32
    %c0_i32_1 = arith.constant 0 : i32
    return %c0_i32, %c0_i32_0 : i32, i32
  }
  func.func @transform_3(%arg0: i32, %arg1: i32) -> (i32, i32) {
    %c0_i32 = arith.constant 0 : i32
    %c0_i32_0 = arith.constant 0 : i32
    %c0_i32_1 = arith.constant 0 : i32
    return %c0_i32, %c0_i32_0 : i32, i32
  }
  func.func @transform_4(%arg0: i32, %arg1: i32) -> (i32, i32, i32) {
    %c0_i32 = arith.constant 0 : i32
    %c0_i32_0 = arith.constant 0 : i32
    %c0_i32_1 = arith.constant 0 : i32
    %c0_i32_2 = arith.constant 0 : i32
    return %c0_i32, %c0_i32_0, %c0_i32_1 : i32, i32, i32
  }
  func.func @transform_5(%arg0: i32, %arg1: i32) -> (i32, i32, i32) {
    %c0_i32 = arith.constant 0 : i32
    %c0_i32_0 = arith.constant 0 : i32
    %c0_i32_1 = arith.constant 0 : i32
    %c0_i32_2 = arith.constant 0 : i32
    return %c0_i32, %c0_i32_0, %c0_i32_1 : i32, i32, i32
  }
  func.func @transform_6(%arg0: i32, %arg1: i32) -> (i32, i32, i32) {
    %c0_i32 = arith.constant 0 : i32
    %c0_i32_0 = arith.constant 0 : i32
    %c0_i32_1 = arith.constant 0 : i32
    %c0_i32_2 = arith.constant 0 : i32
    return %c0_i32, %c0_i32_0, %c0_i32_1 : i32, i32, i32
  }
  func.func @transform_7(%arg0: i32, %arg1: i32) -> (i32, i32, i32) {
    %c0_i32 = arith.constant 0 : i32
    %c0_i32_0 = arith.constant 0 : i32
    %c0_i32_1 = arith.constant 0 : i32
    %c0_i32_2 = arith.constant 0 : i32
    return %c0_i32, %c0_i32_0, %c0_i32_1 : i32, i32, i32
  }
  func.func @transform_8(%arg0: i32, %arg1: i32) -> (i32, i32, i32) {
    %c0_i32 = arith.constant 0 : i32
    %c0_i32_0 = arith.constant 0 : i32
    %c0_i32_1 = arith.constant 0 : i32
    %c0_i32_2 = arith.constant 0 : i32
    return %c0_i32, %c0_i32_0, %c0_i32_1 : i32, i32, i32
  }
  func.func @transform_9(%arg0: i32, %arg1: i32) -> (i32, i32, i32) {
    %c0_i32 = arith.constant 0 : i32
    %c0_i32_0 = arith.constant 0 : i32
    %c0_i32_1 = arith.constant 0 : i32
    %c0_i32_2 = arith.constant 0 : i32
    return %c0_i32, %c0_i32_0, %c0_i32_1 : i32, i32, i32
  }
  func.func @transform_10(%arg0: i32, %arg1: i32) -> (i32, i32, i32, i32) {
    %c0_i32 = arith.constant 0 : i32
    %c0_i32_0 = arith.constant 0 : i32
    %c0_i32_1 = arith.constant 0 : i32
    return %arg0, %c0_i32, %arg1, %c0_i32_0 : i32, i32, i32, i32
  }
  func.func @transform_11(%arg0: i32, %arg1: i32) -> (i32, i32, i32, i32) {
    %c0_i32 = arith.constant 0 : i32
    %c0_i32_0 = arith.constant 0 : i32
    %c0_i32_1 = arith.constant 0 : i32
    %c0_i32_2 = arith.constant 0 : i32
    return %arg0, %c0_i32, %c0_i32_0, %c0_i32_1 : i32, i32, i32, i32
  }
  func.func @transform_12(%arg0: i32, %arg1: i32) -> (i32, i32, i32, i32) {
    %c0_i32 = arith.constant 0 : i32
    %c0_i32_0 = arith.constant 0 : i32
    %c0_i32_1 = arith.constant 0 : i32
    %c0_i32_2 = arith.constant 0 : i32
    return %arg0, %c0_i32, %c0_i32_0, %c0_i32_1 : i32, i32, i32, i32
  }
}

</mosaic_0001>

<llo_original>
// kernel: tpu_custom_call.1
$region0: #{tpu_custom_call.1}
  #allocation0 [shape = 'u32[]', space=smem, size = 0x4, offset = 0x4, fixed_abs, tag = 'smem constant byte address 0x4 - core index']
  #allocation1 [shape = 'u32[72,128]{1,0:T(1,128)}', space=vmem, size = 0x9000, scoped, tag = 'internal scratch']
  %s0 = inlined_call_operand.vmem [shape: bf16[2,16,32], index: 0, kind: input, shape index: {}]
  %s1 = inlined_call_operand.vmem [shape: bf16[2,8,8], index: 1, kind: input, shape index: {}]
  %s2 = inlined_call_operand.vmem [shape: bf16[8,32], index: 2, kind: input, shape index: {}]
  %s3 = inlined_call_operand.vmem [shape: f32[1,32], index: 3, kind: input, shape index: {}]
  %s4 = inlined_call_operand.vmem [shape: bf16[4,32,8], index: 4, kind: input, shape index: {}]
  %s5 = inlined_call_operand.vmem [shape: f32[4,1,8], index: 5, kind: input, shape index: {}]
  %s6 = inlined_call_operand.vmem [shape: bf16[4,32,8], index: 6, kind: input, shape index: {}]
  %s7 = inlined_call_operand.vmem [shape: f32[4,1,8], index: 7, kind: input, shape index: {}]
  %s8 = inlined_call_operand.vmem [shape: bf16[4,32,8], index: 8, kind: input, shape index: {}]
  %s9 = inlined_call_operand.vmem [shape: f32[4,1,8], index: 9, kind: input, shape index: {}]
  %s10 = inlined_call_operand.vmem [shape: bf16[2,4,16,8], index: 10, kind: output, shape index: {0}]
  %s11 = inlined_call_operand.hbm [shape: bf16[2,4,8,8], index: 11, kind: output, shape index: {1}]
  %s12 = inlined_call_operand.hbm [shape: bf16[2,4,8,8], index: 12, kind: output, shape index: {2}]
  %13 = xla_tuple %s10, %s11, %s12
  %s14 = sld [smem:[#allocation0]]
  $region93: #{tpu_custom_call.1} parent=0
    _
  %s16 = ssub.s32 1, %s14
  %s17 = scalar_select 0, %s16, %s14
  $region1: #{tpu_custom_call.1} parent=0
    #allocation2 [shape = 'u8[16384]{0}', space=vmem, size = 0x4000, scoped, tag = 'output window, operand 1']
    #allocation3 [shape = 's32[2]{0}', space=sflag, size = 0x8, scoped, tag = 'scoped memory for tpu_custom_call.1']
    #allocation4 [shape = 'u8[16384]{0}', space=vmem, size = 0x4000, scoped, tag = 'output window, operand 2']
    #allocation5 [shape = 's32[2]{0}', space=sflag, size = 0x8, scoped, tag = 'scoped memory for tpu_custom_call.1']
    %18 = vsyncpa [#allocation3], 0
    %s19 = scalar_lea.sflag [#allocation3], 1
    %20 = vsyncpa %s19, 0
    %21 = vsyncpa [#allocation5], 0
    %s22 = scalar_lea.sflag [#allocation5], 1
    %23 = vsyncpa %s22, 0
    loop: start=0, step=1, limit=4
    $region2: #{tpu_custom_call.1} parent=1 // loop_pre_header
      _
    $region3: #{tpu_custom_call.1} parent=1 // loop_header
      %s25 = sphi 0, %s29
      %p26 = scmp.ge.s32.totalorder %s25, 4
      %s32 = sphi 0, %s44
      %s33 = sphi 0, %s40
      %s34 = sphi 0, %s32
      %s35 = sphi 0, %s33
      %s36 = sphi 0, %s34
      %s37 = sphi 0, %s35
      %s49 = sphi 0, %s51
      %s52 = sphi 0, %s49
      %s53 = sphi 0, %s52
      %s69 = sphi 0, %s53
      %s75 = sphi 0, %s77
      %s78 = sphi 0, %s75
      %s79 = sphi 0, %s78
      %s95 = sphi 0, %s79
      %s99 = sphi 0, %s99
      %s101 = sphi 0, %s99
      %s102 = sphi 0, %s101
      %s116 = sphi 0, %s102
      %s120 = sphi 0, %s120
      %s122 = sphi 0, %s120
      %s123 = sphi 0, %s122
      %s137 = sphi 0, %s123
      %s141 = sphi 0, %s141
      %s143 = sphi 0, %s141
      %s144 = sphi 0, %s143
      %s158 = sphi 0, %s144
      %s162 = sphi 0, %s162
      %s164 = sphi 0, %s162
      %s165 = sphi 0, %s164
      %s179 = sphi 0, %s165
      %s183 = sphi 0, %s183
      %s185 = sphi 0, %s183
      %s186 = sphi 0, %s185
      %s200 = sphi 0, %s186
      %s204 = sphi 0, %s204
      %s206 = sphi 0, %s204
      %s207 = sphi 0, %s206
      %s221 = sphi 0, %s207
      %s225 = sphi 0, %s225
      %s227 = sphi 0, %s225
      %s228 = sphi 0, %s227
      %s242 = sphi 0, %s228
      %s246 = sphi 0, %s246
      %s248 = sphi 0, %s246
      %s249 = sphi 0, %s248
      %s263 = sphi 0, %s249
      %s271 = sphi 0, %s273
      %s274 = sphi 0, %s271
      %s275 = sphi 0, %s274
      %s291 = sphi 0, %s275
      %s297 = sphi 0, %s299
      %s300 = sphi 0, %s297
      %s301 = sphi 0, %s300
      %s317 = sphi 0, %s301
      %s323 = sphi 0, %s325
      %s326 = sphi 0, %s323
      %s327 = sphi 0, %s326
      %s343 = sphi 0, %s327
    $region4: #{tpu_custom_call.1} parent=1 // loop_header_branch
      %28 = sbr.rel (%p26) target = $region8
    $region5: #{tpu_custom_call.1} parent=1 // loop_body
      %s30 = ssub.s32 %s25, 1
      %s31 = ssub.s32 %s25, 2
      %s38 = sadd.s32 1, %s33
      %p39 = scmp.ge.s32.totalorder %s38, 1
      %s40 = scalar_select %p39, 0, %s38
      %s41 = sadd.s32 1, %s32
      %s42 = scalar_select %p39, %s41, %s32
      %p43 = scmp.ge.s32.totalorder %s42, 2
      %s44 = scalar_select %p43, 0, %s42
      %s45 = ssub.s32 %s32, %s44
      %s46 = ssub.s32 %s33, %s40
      %s47 = sor.u32 %s45, %s46
      %p48 = scmp.eq.s32.totalorder %s47, 0
      %s50 = sadd.s32 %s49, 1
      %s51 = scalar_select %p48, %s49, %s50
      %p54 = pneg %p48
      %p55 = scmp.eq.s32.totalorder %s25, 1
      %p56 = por %p54, %p55
      %p57 = scmp.ne.s32.totalorder %s49, %s52
      %p58 = scmp.eq.s32.totalorder %s25, 0
      %p59 = por %p57, %p58
      %p60 = scmp.ne.s32.totalorder %s49, %s52
      %p61 = scmp.eq.s32.totalorder %s30, 1
      %p62 = por %p60, %p61
      %p63 = scmp.ne.s32.totalorder %s52, %s53
      %p64 = scmp.eq.s32.totalorder %s30, 0
      %p65 = por %p63, %p64
      %p66 = scmp.ne.s32.totalorder %s52, %s53
      %p67 = scmp.eq.s32.totalorder %s31, 1
      %p68 = por %p66, %p67
      %p70 = scmp.ne.s32.totalorder %s53, %s69
      %p71 = scmp.eq.s32.totalorder %s31, 0
      %p72 = por %p70, %p71
      %s73 = ssub.s32 %s32, %s44
      %p74 = scmp.eq.s32.totalorder %s73, 0
      %s76 = sadd.s32 %s75, 1
      %s77 = scalar_select %p74, %s75, %s76
      %p80 = pneg %p74
      %p81 = scmp.eq.s32.totalorder %s25, 1
      %p82 = por %p80, %p81
      %p83 = scmp.ne.s32.totalorder %s75, %s78
      %p84 = scmp.eq.s32.totalorder %s25, 0
      %p85 = por %p83, %p84
      %p86 = scmp.ne.s32.totalorder %s75, %s78
      %p87 = scmp.eq.s32.totalorder %s30, 1
      %p88 = por %p86, %p87
      %p89 = scmp.ne.s32.totalorder %s78, %s79
      %p90 = scmp.eq.s32.totalorder %s30, 0
      %p91 = por %p89, %p90
      %p92 = scmp.ne.s32.totalorder %s78, %s79
      %p93 = scmp.eq.s32.totalorder %s31, 1
      %p94 = por %p92, %p93
      %p96 = scmp.ne.s32.totalorder %s79, %s95
      %p97 = scmp.eq.s32.totalorder %s31, 0
      %p98 = por %p96, %p97
      %s100 = sadd.s32 %s99, 1
      %p103 = scmp.eq.s32.totalorder %s25, 1
      %p104 = scmp.ne.s32.totalorder %s99, %s101
      %p105 = scmp.eq.s32.totalorder %s25, 0
      %p106 = por %p104, %p105
      %p107 = scmp.ne.s32.totalorder %s99, %s101
      %p108 = scmp.eq.s32.totalorder %s30, 1
      %p109 = por %p107, %p108
      %p110 = scmp.ne.s32.totalorder %s101, %s102
      %p111 = scmp.eq.s32.totalorder %s30, 0
      %p112 = por %p110, %p111
      %p113 = scmp.ne.s32.totalorder %s101, %s102
      %p114 = scmp.eq.s32.totalorder %s31, 1
      %p115 = por %p113, %p114
      %p117 = scmp.ne.s32.totalorder %s102, %s116
      %p118 = scmp.eq.s32.totalorder %s31, 0
      %p119 = por %p117, %p118
      %s121 = sadd.s32 %s120, 1
      %p124 = scmp.eq.s32.totalorder %s25, 1
      %p125 = scmp.ne.s32.totalorder %s120, %s122
      %p126 = scmp.eq.s32.totalorder %s25, 0
      %p127 = por %p125, %p126
      %p128 = scmp.ne.s32.totalorder %s120, %s122
      %p129 = scmp.eq.s32.totalorder %s30, 1
      %p130 = por %p128, %p129
      %p131 = scmp.ne.s32.totalorder %s122, %s123
      %p132 = scmp.eq.s32.totalorder %s30, 0
      %p133 = por %p131, %p132
      %p134 = scmp.ne.s32.totalorder %s122, %s123
      %p135 = scmp.eq.s32.totalorder %s31, 1
      %p136 = por %p134, %p135
      %p138 = scmp.ne.s32.totalorder %s123, %s137
      %p139 = scmp.eq.s32.totalorder %s31, 0
      %p140 = por %p138, %p139
      %s142 = sadd.s32 %s141, 1
      %p145 = scmp.eq.s32.totalorder %s25, 1
      %p146 = scmp.ne.s32.totalorder %s141, %s143
      %p147 = scmp.eq.s32.totalorder %s25, 0
      %p148 = por %p146, %p147
      %p149 = scmp.ne.s32.totalorder %s141, %s143
      %p150 = scmp.eq.s32.totalorder %s30, 1
      %p151 = por %p149, %p150
      %p152 = scmp.ne.s32.totalorder %s143, %s144
      %p153 = scmp.eq.s32.totalorder %s30, 0
      %p154 = por %p152, %p153
      %p155 = scmp.ne.s32.totalorder %s143, %s144
      %p156 = scmp.eq.s32.totalorder %s31, 1
      %p157 = por %p155, %p156
      %p159 = scmp.ne.s32.totalorder %s144, %s158
      %p160 = scmp.eq.s32.totalorder %s31, 0
      %p161 = por %p159, %p160
      %s163 = sadd.s32 %s162, 1
      %p166 = scmp.eq.s32.totalorder %s25, 1
      %p167 = scmp.ne.s32.totalorder %s162, %s164
      %p168 = scmp.eq.s32.totalorder %s25, 0
      %p169 = por %p167, %p168
      %p170 = scmp.ne.s32.totalorder %s162, %s164
      %p171 = scmp.eq.s32.totalorder %s30, 1
      %p172 = por %p170, %p171
      %p173 = scmp.ne.s32.totalorder %s164, %s165
      %p174 = scmp.eq.s32.totalorder %s30, 0
      %p175 = por %p173, %p174
      %p176 = scmp.ne.s32.totalorder %s164, %s165
      %p177 = scmp.eq.s32.totalorder %s31, 1
      %p178 = por %p176, %p177
      %p180 = scmp.ne.s32.totalorder %s165, %s179
      %p181 = scmp.eq.s32.totalorder %s31, 0
      %p182 = por %p180, %p181
      %s184 = sadd.s32 %s183, 1
      %p187 = scmp.eq.s32.totalorder %s25, 1
      %p188 = scmp.ne.s32.totalorder %s183, %s185
      %p189 = scmp.eq.s32.totalorder %s25, 0
      %p190 = por %p188, %p189
      %p191 = scmp.ne.s32.totalorder %s183, %s185
      %p192 = scmp.eq.s32.totalorder %s30, 1
      %p193 = por %p191, %p192
      %p194 = scmp.ne.s32.totalorder %s185, %s186
      %p195 = scmp.eq.s32.totalorder %s30, 0
      %p196 = por %p194, %p195
      %p197 = scmp.ne.s32.totalorder %s185, %s186
      %p198 = scmp.eq.s32.totalorder %s31, 1
      %p199 = por %p197, %p198
      %p201 = scmp.ne.s32.totalorder %s186, %s200
      %p202 = scmp.eq.s32.totalorder %s31, 0
      %p203 = por %p201, %p202
      %s205 = sadd.s32 %s204, 1
      %p208 = scmp.eq.s32.totalorder %s25, 1
      %p209 = scmp.ne.s32.totalorder %s204, %s206
      %p210 = scmp.eq.s32.totalorder %s25, 0
      %p211 = por %p209, %p210
      %p212 = scmp.ne.s32.totalorder %s204, %s206
      %p213 = scmp.eq.s32.totalorder %s30, 1
      %p214 = por %p212, %p213
      %p215 = scmp.ne.s32.totalorder %s206, %s207
      %p216 = scmp.eq.s32.totalorder %s30, 0
      %p217 = por %p215, %p216
      %p218 = scmp.ne.s32.totalorder %s206, %s207
      %p219 = scmp.eq.s32.totalorder %s31, 1
      %p220 = por %p218, %p219
      %p222 = scmp.ne.s32.totalorder %s207, %s221
      %p223 = scmp.eq.s32.totalorder %s31, 0
      %p224 = por %p222, %p223
      %s226 = sadd.s32 %s225, 1
      %p229 = scmp.eq.s32.totalorder %s25, 1
      %p230 = scmp.ne.s32.totalorder %s225, %s227
      %p231 = scmp.eq.s32.totalorder %s25, 0
      %p232 = por %p230, %p231
      %p233 = scmp.ne.s32.totalorder %s225, %s227
      %p234 = scmp.eq.s32.totalorder %s30, 1
      %p235 = por %p233, %p234
      %p236 = scmp.ne.s32.totalorder %s227, %s228
      %p237 = scmp.eq.s32.totalorder %s30, 0
      %p238 = por %p236, %p237
      %p239 = scmp.ne.s32.totalorder %s227, %s228
      %p240 = scmp.eq.s32.totalorder %s31, 1
      %p241 = por %p239, %p240
      %p243 = scmp.ne.s32.totalorder %s228, %s242
      %p244 = scmp.eq.s32.totalorder %s31, 0
      %p245 = por %p243, %p244
      %s247 = sadd.s32 %s246, 1
      %p250 = scmp.eq.s32.totalorder %s25, 1
      %p251 = scmp.ne.s32.totalorder %s246, %s248
      %p252 = scmp.eq.s32.totalorder %s25, 0
      %p253 = por %p251, %p252
      %p254 = scmp.ne.s32.totalorder %s246, %s248
      %p255 = scmp.eq.s32.totalorder %s30, 1
      %p256 = por %p254, %p255
      %p257 = scmp.ne.s32.totalorder %s248, %s249
      %p258 = scmp.eq.s32.totalorder %s30, 0
      %p259 = por %p257, %p258
      %p260 = scmp.ne.s32.totalorder %s248, %s249
      %p261 = scmp.eq.s32.totalorder %s31, 1
      %p262 = por %p260, %p261
      %p264 = scmp.ne.s32.totalorder %s249, %s263
      %p265 = scmp.eq.s32.totalorder %s31, 0
      %p266 = por %p264, %p265
      %s267 = ssub.s32 %s32, %s44
      %s268 = ssub.s32 %s33, %s40
      %s269 = sor.u32 %s267, %s268
      %p270 = scmp.eq.s32.totalorder %s269, 0
      %s272 = sadd.s32 %s271, 1
      %s273 = scalar_select %p270, %s271, %s272
      %p276 = pneg %p270
      %p277 = scmp.eq.s32.totalorder %s25, 1
      %p278 = por %p276, %p277
      %p279 = scmp.ne.s32.totalorder %s271, %s274
      %p280 = scmp.eq.s32.totalorder %s25, 0
      %p281 = por %p279, %p280
      %p282 = scmp.ne.s32.totalorder %s271, %s274
      %p283 = scmp.eq.s32.totalorder %s30, 1
      %p284 = por %p282, %p283
      %p285 = scmp.ne.s32.totalorder %s274, %s275
      %p286 = scmp.eq.s32.totalorder %s30, 0
      %p287 = por %p285, %p286
      %p288 = scmp.ne.s32.totalorder %s274, %s275
      %p289 = scmp.eq.s32.totalorder %s31, 1
      %p290 = por %p288, %p289
      %p292 = scmp.ne.s32.totalorder %s275, %s291
      %p293 = scmp.eq.s32.totalorder %s31, 0
      %p294 = por %p292, %p293
      %s295 = ssub.s32 %s32, %s44
      %p296 = scmp.eq.s32.totalorder %s295, 0
      %s298 = sadd.s32 %s297, 1
      %s299 = scalar_select %p296, %s297, %s298
      %p302 = pneg %p296
      %p303 = scmp.eq.s32.totalorder %s25, 1
      %p304 = por %p302, %p303
      %p305 = scmp.ne.s32.totalorder %s297, %s300
      %p306 = scmp.eq.s32.totalorder %s25, 0
      %p307 = por %p305, %p306
      %p308 = scmp.ne.s32.totalorder %s297, %s300
      %p309 = scmp.eq.s32.totalorder %s30, 1
      %p310 = por %p308, %p309
      %p311 = scmp.ne.s32.totalorder %s300, %s301
      %p312 = scmp.eq.s32.totalorder %s30, 0
      %p313 = por %p311, %p312
      %p314 = scmp.ne.s32.totalorder %s300, %s301
      %p315 = scmp.eq.s32.totalorder %s31, 1
      %p316 = por %p314, %p315
      %p318 = scmp.ne.s32.totalorder %s301, %s317
      %p319 = scmp.eq.s32.totalorder %s31, 0
      %p320 = por %p318, %p319
      %s321 = ssub.s32 %s32, %s44
      %p322 = scmp.eq.s32.totalorder %s321, 0
      %s324 = sadd.s32 %s323, 1
      %s325 = scalar_select %p322, %s323, %s324
      %p328 = pneg %p322
      %p329 = scmp.eq.s32.totalorder %s25, 1
      %p330 = por %p328, %p329
      %p331 = scmp.ne.s32.totalorder %s323, %s326
      %p332 = scmp.eq.s32.totalorder %s25, 0
      %p333 = por %p331, %p332
      %p334 = scmp.ne.s32.totalorder %s323, %s326
      %p335 = scmp.eq.s32.totalorder %s30, 1
      %p336 = por %p334, %p335
      %p337 = scmp.ne.s32.totalorder %s326, %s327
      %p338 = scmp.eq.s32.totalorder %s30, 0
      %p339 = por %p337, %p338
      %p340 = scmp.ne.s32.totalorder %s326, %s327
      %p341 = scmp.eq.s32.totalorder %s31, 1
      %p342 = por %p340, %p341
      %p344 = scmp.ne.s32.totalorder %s327, %s343
      %p345 = scmp.eq.s32.totalorder %s31, 0
      %p346 = por %p344, %p345
      %p347 = scmp.le.s32.totalorder 1, %s25
      %p348 = scmp.lt.s32.totalorder %s25, 3
      %p349 = pnand %p347, %p348
      %p350 = pneg %p349
      // Predicated region
      $region9: #{tpu_custom_call.1} parent=5 // pred_check
        _
      $region10: #{tpu_custom_call.1} parent=5 // pred_check_branch
        %352 = sbr.rel (%p349) target = $region12
      $region11: #{tpu_custom_call.1} parent=5 // pred_region
        %s353 = ssub.s32 %s25, 1
        // Predicated region
        $region13: #{tpu_custom_call.1} parent=11 // pred_check
          %p354 = pneg %p112
        $region14: #{tpu_custom_call.1} parent=11 // pred_check_branch
          %356 = sbr.rel (%p354) target = $region16
        $region15: #{tpu_custom_call.1} parent=11 // pred_region
          _
        $region16: #{tpu_custom_call.1} parent=11 // pred_fallthru
          _
        // Predicated region
        $region17: #{tpu_custom_call.1} parent=11 // pred_check
          %p357 = pneg %p133
        $region18: #{tpu_custom_call.1} parent=11 // pred_check_branch
          %359 = sbr.rel (%p357) target = $region20
        $region19: #{tpu_custom_call.1} parent=11 // pred_region
          _
        $region20: #{tpu_custom_call.1} parent=11 // pred_fallthru
          _
        // Predicated region
        $region21: #{tpu_custom_call.1} parent=11 // pred_check
          %p360 = pneg %p154
        $region22: #{tpu_custom_call.1} parent=11 // pred_check_branch
          %362 = sbr.rel (%p360) target = $region24
        $region23: #{tpu_custom_call.1} parent=11 // pred_region
          _
        $region24: #{tpu_custom_call.1} parent=11 // pred_fallthru
          _
        // Predicated region
        $region25: #{tpu_custom_call.1} parent=11 // pred_check
          %p363 = pneg %p175
        $region26: #{tpu_custom_call.1} parent=11 // pred_check_branch
          %365 = sbr.rel (%p363) target = $region28
        $region27: #{tpu_custom_call.1} parent=11 // pred_region
          _
        $region28: #{tpu_custom_call.1} parent=11 // pred_fallthru
          _
        // Predicated region
        $region29: #{tpu_custom_call.1} parent=11 // pred_check
          %p366 = pneg %p196
        $region30: #{tpu_custom_call.1} parent=11 // pred_check_branch
          %368 = sbr.rel (%p366) target = $region32
        $region31: #{tpu_custom_call.1} parent=11 // pred_region
          _
        $region32: #{tpu_custom_call.1} parent=11 // pred_fallthru
          _
        // Predicated region
        $region33: #{tpu_custom_call.1} parent=11 // pred_check
          %p369 = pneg %p217
        $region34: #{tpu_custom_call.1} parent=11 // pred_check_branch
          %371 = sbr.rel (%p369) target = $region36
        $region35: #{tpu_custom_call.1} parent=11 // pred_region
          _
        $region36: #{tpu_custom_call.1} parent=11 // pred_fallthru
          _
        // Predicated region
        $region37: #{tpu_custom_call.1} parent=11 // pred_check
          %p372 = pneg %p238
        $region38: #{tpu_custom_call.1} parent=11 // pred_check_branch
          %374 = sbr.rel (%p372) target = $region40
        $region39: #{tpu_custom_call.1} parent=11 // pred_region
          _
        $region40: #{tpu_custom_call.1} parent=11 // pred_fallthru
          _
        // Predicated region
        $region41: #{tpu_custom_call.1} parent=11 // pred_check
          %p375 = pneg %p259
        $region42: #{tpu_custom_call.1} parent=11 // pred_check_branch
          %377 = sbr.rel (%p375) target = $region44
        $region43: #{tpu_custom_call.1} parent=11 // pred_region
          _
        $region44: #{tpu_custom_call.1} parent=11 // pred_fallthru
          _
      $region12: #{tpu_custom_call.1} parent=5 // pred_fallthru
        _
      %p378 = scmp.lt.s32.totalorder %s25, 2
      // Predicated region
      $region45: #{tpu_custom_call.1} parent=5 // pred_check
        %p379 = pneg %p378
      $region46: #{tpu_custom_call.1} parent=5 // pred_check_branch
        %381 = sbr.rel (%p379) target = $region48
      $region47: #{tpu_custom_call.1} parent=5 // pred_region
        // Predicated region
        $region49: #{tpu_custom_call.1} parent=47 // pred_check
          %p382 = pneg %p59
        $region50: #{tpu_custom_call.1} parent=47 // pred_check_branch
          %384 = sbr.rel (%p382) target = $region52
        $region51: #{tpu_custom_call.1} parent=47 // pred_region
          %s385 = smul.u32 2, %s33
          %p386 = scmp.lt.s32.totalorder %s32, 1
          %s387 = scalar_select %p386, %s32, 1
          %p388 = scmp.lt.s32.totalorder %s385, 1
          %s389 = scalar_select %p388, %s385, 1
          %s390 = smul.addr %s387, 2
          %s391 = sadd.s32 %s389, %s390
          %s392 = smul.addr %s391, 4
          %s393 = scalar_lea.vmem %s0, %s392
          %s394 = smul.u32 2, %s33
        $region52: #{tpu_custom_call.1} parent=47 // pred_fallthru
          _
        // Predicated region
        $region53: #{tpu_custom_call.1} parent=47 // pred_check
          %p395 = pneg %p85
        $region54: #{tpu_custom_call.1} parent=47 // pred_check_branch
          %397 = sbr.rel (%p395) target = $region56
        $region55: #{tpu_custom_call.1} parent=47 // pred_region
          %p398 = scmp.lt.s32.totalorder %s32, 1
          %s399 = scalar_select %p398, %s32, 1
          %s400 = smul.addr %s399, 4
          %s401 = scalar_lea.vmem %s1, %s400
        $region56: #{tpu_custom_call.1} parent=47 // pred_fallthru
          _
      $region48: #{tpu_custom_call.1} parent=5 // pred_fallthru
        _
      %p402 = scmp.le.s32.totalorder 1, %s25
      %p403 = scmp.lt.s32.totalorder %s25, 3
      %p404 = pnand %p402, %p403
      %p405 = pneg %p404
      // Predicated region
      $region57: #{tpu_custom_call.1} parent=5 // pred_check
        _
      $region58: #{tpu_custom_call.1} parent=5 // pred_check_branch
        %407 = sbr.rel (%p404) target = $region60
      $region59: #{tpu_custom_call.1} parent=5 // pred_region
        %s408 = ssub.s32 %s25, 1
        %s409 = smul.u32 2, %s35
        %p410 = scmp.lt.s32.totalorder %s34, 1
        %s411 = scalar_select %p410, %s34, 1
        %p412 = scmp.lt.s32.totalorder %s409, 1
        %s413 = scalar_select %p412, %s409, 1
        %s414 = smul.addr %s411, 2
        %s415 = sadd.s32 %s413, %s414
        %s416 = smul.addr %s415, 4
        %s417 = scalar_lea.vmem %s0, %s416
        %p418 = pneg %p65
        %p419 = pneg %p62
        %p420 = scmp.lt.s32.totalorder %s34, 1
        %s421 = scalar_select %p420, %s34, 1
        %s422 = smul.addr %s421, 4
        %s423 = scalar_lea.vmem %s1, %s422
        %p424 = pneg %p91
        %p425 = pneg %p88
        %p426 = pneg %p112
        %p427 = pneg %p109
        %p428 = pneg %p133
        %p429 = pneg %p130
        %p430 = pneg %p154
        %p431 = pneg %p151
        %p432 = pneg %p175
        %p433 = pneg %p172
        %p434 = pneg %p196
        %p435 = pneg %p193
        %p436 = pneg %p217
        %p437 = pneg %p214
        %p438 = pneg %p238
        %p439 = pneg %p235
        %p440 = pneg %p259
        %p441 = pneg %p256
        %p442 = pneg %p287
        %p443 = pneg %p284
        %s444 = smul.u32 2, %s35
        %p445 = scmp.lt.s32.totalorder %s34, 1
        %s446 = scalar_select %p445, %s34, 1
        %p447 = scmp.lt.s32.totalorder %s444, 1
        %s448 = scalar_select %p447, %s444, 1
        %s449 = smul.addr %s446, 8
        %s450 = sadd.s32 %s448, %s449
        %s451 = smul.addr %s450, 4
        %s452 = scalar_lea.vmem %s10, %s451
        %p453 = pneg %p313
        %p454 = pneg %p310
        %s455 = sand.u32 %s300, 1
        %s456 = scalar_lea.sflag [#allocation3], %s455
        %s457 = sand.u32 %s300, 1
        %s458 = smul.addr %s457, 16
        %s459 = scalar_lea.vmem [#allocation2], %s458
        %p460 = pneg %p339
        %p461 = pneg %p336
        %s462 = sand.u32 %s326, 1
        %s463 = scalar_lea.sflag [#allocation5], %s462
        %s464 = sand.u32 %s326, 1
        %s465 = smul.addr %s464, 16
        %s466 = scalar_lea.vmem [#allocation4], %s465
        %s467 = smul.u32 2, %s35
        %p468 = scmp.lt.s32.totalorder %s34, 1
        %s469 = scalar_select %p468, %s34, 1
        %p470 = scmp.lt.s32.totalorder %s467, 1
        %s471 = scalar_select %p470, %s467, 1
        %s472 = smul.addr %s469, 2
        %s473 = sadd.s32 %s471, %s472
        %s474 = smul.addr %s473, 4
        %s475 = scalar_lea.vmem %s0, %s474
        %s476 = smul.u32 2, %s35
        %p477 = scmp.lt.s32.totalorder %s34, 1
        %s478 = scalar_select %p477, %s34, 1
        %s479 = smul.addr %s478, 4
        %s480 = scalar_lea.vmem %s1, %s479
        %s481 = smul.u32 2, %s35
        %p482 = scmp.lt.s32.totalorder %s34, 1
        %s483 = scalar_select %p482, %s34, 1
        %p484 = scmp.lt.s32.totalorder %s481, 1
        %s485 = scalar_select %p484, %s481, 1
        %s486 = smul.addr %s483, 8
        %s487 = sadd.s32 %s485, %s486
        %s488 = smul.addr %s487, 4
        %s489 = scalar_lea.vmem %s10, %s488
        %s490 = smul.u32 2, %s35
        %p492 = scmp.eq.s32.totalorder %s35, 0
        // Predicated region
        $region61: #{tpu_custom_call.1} parent=59 // pred_check
          %p493 = pneg %p492
        $region62: #{tpu_custom_call.1} parent=59 // pred_check_branch
          %495 = sbr.rel (%p493) target = $region64
        $region63: #{tpu_custom_call.1} parent=59 // pred_region
          %v496 = vld [vmem:[%s480] sm:$0xf]
          %v497 = vld [vmem:[%s2] sm:$0xf]
          %v498 = vld [vmem:[%s3] sm:$0x1]
          %v500 = vperm.slane %v498, 0
          %vm502 = vcmask 64512
          %v504 = vsel %vm502, %v496, 0
          %vm506 = vcmask 1043456
          %v508 = vsel %vm506, %v497, 0
          %510 = vmatpush.bf16.msra.mxu0 0
          %511 = vmatpush.bf16.msra.mxu0 0
          %512 = vmatpush.bf16.msra.mxu0 0
          %513 = vmatpush.bf16.msra.mxu0 0
          %514 = vmatpush.bf16.msra.mxu0 0
          %515 = vmatpush.bf16.msra.mxu0 0
          %516 = vmatpush.bf16.msra.mxu0 0
          %517 = vmatpush.bf16.msra.mxu0 %v508
          %518 = vmatmul.bf16.gmra.mxu0 %v504
          %v519 = vpop.f32.mrf.mxu0
          %v520 = vadd.f32 %v500, %v519
          %v521 = vpop.f32.mrf.mxu0
          %522 = vdwg.mxu0
          %v523 = vmax.f32 %v520, 0.0
          %v524 = vpack.c.bf16 %v523, %v523
          %v525 = vld [vmem:[%s6] sm:$0xf]
          %v526 = vld [vmem:[%s6 + $0x4] sm:$0xf]
          %v527 = vld [vmem:[%s6 + $0x8] sm:$0xf]
          %v528 = vld [vmem:[%s6 + $0xc] sm:$0xf]
          %v529 = vld [vmem:[%s7] sm:$0x1]
          %v531 = vperm.slane %v529, 0
          %v537 = vunpack.c.l.b16 %v525
          %v538 = vunpack.c.l.b16 %v526
          %v539 = vunpack.c.l.b16 %v527
          %v540 = vunpack.c.l.b16 %v528
          %v541 = vpack.c.b16 %v538, %v537
          %v542 = vpack.c.b16 %v540, %v539
          %vm545 = vcmask 261120
          %v547 = vsel %vm545, %v524, 0
          %549 = vmatpush.bf16.msra.mxu0 0
          %550 = vmatpush.bf16.msra.mxu0 0
          %551 = vmatpush.bf16.msra.mxu0 0
          %552 = vmatpush.bf16.msra.mxu0 0
          %553 = vmatpush.bf16.msra.mxu0 0
          %554 = vmatpush.bf16.msra.mxu0 0
          %555 = vmatpush.bf16.msra.mxu0 %v542
          %556 = vmatpush.bf16.msra.mxu0 %v541
          %557 = vmatmul.bf16.gmra.mxu0 %v547
          %v558 = vpop.f32.mrf.mxu0
          %v559 = vadd.f32 %v531, %v558
          %v560 = vpop.f32.mrf.mxu0
          %561 = vdwg.mxu0
          %v562 = vpack.c.bf16 %v559, %v559
          %vm563 = vcmask 60416
          %564 = vst.msk [vmem:[%s459] sm:$0xf] %vm563, %v562
          %v565 = vld [vmem:[%s8] sm:$0xf]
          %v566 = vld [vmem:[%s8 + $0x4] sm:$0xf]
          %v567 = vld [vmem:[%s8 + $0x8] sm:$0xf]
          %v568 = vld [vmem:[%s8 + $0xc] sm:$0xf]
          %v569 = vld [vmem:[%s9] sm:$0x1]
          %v571 = vperm.slane %v569, 0
          %v577 = vunpack.c.l.b16 %v565
          %v578 = vunpack.c.l.b16 %v566
          %v579 = vunpack.c.l.b16 %v567
          %v580 = vunpack.c.l.b16 %v568
          %v581 = vpack.c.b16 %v578, %v577
          %v582 = vpack.c.b16 %v580, %v579
          %585 = vmatpush.bf16.msra.mxu0 0
          %586 = vmatpush.bf16.msra.mxu0 0
          %587 = vmatpush.bf16.msra.mxu0 0
          %588 = vmatpush.bf16.msra.mxu0 0
          %589 = vmatpush.bf16.msra.mxu0 0
          %590 = vmatpush.bf16.msra.mxu0 0
          %591 = vmatpush.bf16.msra.mxu0 %v582
          %592 = vmatpush.bf16.msra.mxu0 %v581
          %593 = vmatmul.bf16.gmra.mxu0 %v547
          %v594 = vpop.f32.mrf.mxu0
          %v595 = vadd.f32 %v571, %v594
          %v596 = vpop.f32.mrf.mxu0
          %597 = vdwg.mxu0
          %v598 = vpack.c.bf16 %v595, %v595
          %599 = vst.msk [vmem:[%s466] sm:$0xf] %vm563, %v598
          %s600 = scalar_lea.vmem %s6, 16
          %v601 = vld [vmem:[%s600] sm:$0xf]
          %v602 = vld [vmem:[%s600 + $0x4] sm:$0xf]
          %v603 = vld [vmem:[%s600 + $0x8] sm:$0xf]
          %v604 = vld [vmem:[%s600 + $0xc] sm:$0xf]
          %s605 = scalar_lea.vmem %s7, 1
          %v606 = vld [vmem:[%s605] sm:$0x1]
          %v608 = vperm.slane %v606, 0
          %v614 = vunpack.c.l.b16 %v601
          %v615 = vunpack.c.l.b16 %v602
          %v616 = vunpack.c.l.b16 %v603
          %v617 = vunpack.c.l.b16 %v604
          %v618 = vpack.c.b16 %v615, %v614
          %v619 = vpack.c.b16 %v617, %v616
          %622 = vmatpush.bf16.msra.mxu0 0
          %623 = vmatpush.bf16.msra.mxu0 0
          %624 = vmatpush.bf16.msra.mxu0 0
          %625 = vmatpush.bf16.msra.mxu0 0
          %626 = vmatpush.bf16.msra.mxu0 0
          %627 = vmatpush.bf16.msra.mxu0 0
          %628 = vmatpush.bf16.msra.mxu0 %v619
          %629 = vmatpush.bf16.msra.mxu0 %v618
          %630 = vmatmul.bf16.gmra.mxu0 %v547
          %v631 = vpop.f32.mrf.mxu0
          %v632 = vadd.f32 %v608, %v631
          %v633 = vpop.f32.mrf.mxu0
          %634 = vdwg.mxu0
          %v635 = vpack.c.bf16 %v632, %v632
          %s636 = scalar_lea.vmem %s459, 4 [#allocation2]
          %637 = vst.msk [vmem:[%s636] sm:$0xf] %vm563, %v635
          %s638 = scalar_lea.vmem %s8, 16
          %v639 = vld [vmem:[%s638] sm:$0xf]
          %v640 = vld [vmem:[%s638 + $0x4] sm:$0xf]
          %v641 = vld [vmem:[%s638 + $0x8] sm:$0xf]
          %v642 = vld [vmem:[%s638 + $0xc] sm:$0xf]
          %s643 = scalar_lea.vmem %s9, 1
          %v644 = vld [vmem:[%s643] sm:$0x1]
          %v646 = vperm.slane %v644, 0
          %v652 = vunpack.c.l.b16 %v639
          %v653 = vunpack.c.l.b16 %v640
          %v654 = vunpack.c.l.b16 %v641
          %v655 = vunpack.c.l.b16 %v642
          %v656 = vpack.c.b16 %v653, %v652
          %v657 = vpack.c.b16 %v655, %v654
          %660 = vmatpush.bf16.msra.mxu0 0
          %661 = vmatpush.bf16.msra.mxu0 0
          %662 = vmatpush.bf16.msra.mxu0 0
          %663 = vmatpush.bf16.msra.mxu0 0
          %664 = vmatpush.bf16.msra.mxu0 0
          %665 = vmatpush.bf16.msra.mxu0 0
          %666 = vmatpush.bf16.msra.mxu0 %v657
          %667 = vmatpush.bf16.msra.mxu0 %v656
          %668 = vmatmul.bf16.gmra.mxu0 %v547
          %v669 = vpop.f32.mrf.mxu0
          %v670 = vadd.f32 %v646, %v669
          %v671 = vpop.f32.mrf.mxu0
          %672 = vdwg.mxu0
          %v673 = vpack.c.bf16 %v670, %v670
          %s674 = scalar_lea.vmem %s466, 4 [#allocation4]
          %675 = vst.msk [vmem:[%s674] sm:$0xf] %vm563, %v673
          %s676 = scalar_lea.vmem %s6, 32
          %v677 = vld [vmem:[%s676] sm:$0xf]
          %v678 = vld [vmem:[%s676 + $0x4] sm:$0xf]
          %v679 = vld [vmem:[%s676 + $0x8] sm:$0xf]
          %v680 = vld [vmem:[%s676 + $0xc] sm:$0xf]
          %s681 = scalar_lea.vmem %s7, 2
          %v682 = vld [vmem:[%s681] sm:$0x1]
          %v684 = vperm.slane %v682, 0
          %v690 = vunpack.c.l.b16 %v677
          %v691 = vunpack.c.l.b16 %v678
          %v692 = vunpack.c.l.b16 %v679
          %v693 = vunpack.c.l.b16 %v680
          %v694 = vpack.c.b16 %v691, %v690
          %v695 = vpack.c.b16 %v693, %v692
          %698 = vmatpush.bf16.msra.mxu0 0
          %699 = vmatpush.bf16.msra.mxu0 0
          %700 = vmatpush.bf16.msra.mxu0 0
          %701 = vmatpush.bf16.msra.mxu0 0
          %702 = vmatpush.bf16.msra.mxu0 0
          %703 = vmatpush.bf16.msra.mxu0 0
          %704 = vmatpush.bf16.msra.mxu0 %v695
          %705 = vmatpush.bf16.msra.mxu0 %v694
          %706 = vmatmul.bf16.gmra.mxu0 %v547
          %v707 = vpop.f32.mrf.mxu0
          %v708 = vadd.f32 %v684, %v707
          %v709 = vpop.f32.mrf.mxu0
          %710 = vdwg.mxu0
          %v711 = vpack.c.bf16 %v708, %v708
          %s712 = scalar_lea.vmem %s459, 8 [#allocation2]
          %713 = vst.msk [vmem:[%s712] sm:$0xf] %vm563, %v711
          %s714 = scalar_lea.vmem %s8, 32
          %v715 = vld [vmem:[%s714] sm:$0xf]
          %v716 = vld [vmem:[%s714 + $0x4] sm:$0xf]
          %v717 = vld [vmem:[%s714 + $0x8] sm:$0xf]
          %v718 = vld [vmem:[%s714 + $0xc] sm:$0xf]
          %s719 = scalar_lea.vmem %s9, 2
          %v720 = vld [vmem:[%s719] sm:$0x1]
          %v722 = vperm.slane %v720, 0
          %v728 = vunpack.c.l.b16 %v715
          %v729 = vunpack.c.l.b16 %v716
          %v730 = vunpack.c.l.b16 %v717
          %v731 = vunpack.c.l.b16 %v718
          %v732 = vpack.c.b16 %v729, %v728
          %v733 = vpack.c.b16 %v731, %v730
          %736 = vmatpush.bf16.msra.mxu0 0
          %737 = vmatpush.bf16.msra.mxu0 0
          %738 = vmatpush.bf16.msra.mxu0 0
          %739 = vmatpush.bf16.msra.mxu0 0
          %740 = vmatpush.bf16.msra.mxu0 0
          %741 = vmatpush.bf16.msra.mxu0 0
          %742 = vmatpush.bf16.msra.mxu0 %v733
          %743 = vmatpush.bf16.msra.mxu0 %v732
          %744 = vmatmul.bf16.gmra.mxu0 %v547
          %v745 = vpop.f32.mrf.mxu0
          %v746 = vadd.f32 %v722, %v745
          %v747 = vpop.f32.mrf.mxu0
          %748 = vdwg.mxu0
          %v749 = vpack.c.bf16 %v746, %v746
          %s750 = scalar_lea.vmem %s466, 8 [#allocation4]
          %751 = vst.msk [vmem:[%s750] sm:$0xf] %vm563, %v749
          %s752 = scalar_lea.vmem %s6, 48
          %v753 = vld [vmem:[%s752] sm:$0xf]
          %v754 = vld [vmem:[%s752 + $0x4] sm:$0xf]
          %v755 = vld [vmem:[%s752 + $0x8] sm:$0xf]
          %v756 = vld [vmem:[%s752 + $0xc] sm:$0xf]
          %s757 = scalar_lea.vmem %s7, 3
          %v758 = vld [vmem:[%s757] sm:$0x1]
          %v760 = vperm.slane %v758, 0
          %v766 = vunpack.c.l.b16 %v753
          %v767 = vunpack.c.l.b16 %v754
          %v768 = vunpack.c.l.b16 %v755
          %v769 = vunpack.c.l.b16 %v756
          %v770 = vpack.c.b16 %v767, %v766
          %v771 = vpack.c.b16 %v769, %v768
          %774 = vmatpush.bf16.msra.mxu0 0
          %775 = vmatpush.bf16.msra.mxu0 0
          %776 = vmatpush.bf16.msra.mxu0 0
          %777 = vmatpush.bf16.msra.mxu0 0
          %778 = vmatpush.bf16.msra.mxu0 0
          %779 = vmatpush.bf16.msra.mxu0 0
          %780 = vmatpush.bf16.msra.mxu0 %v771
          %781 = vmatpush.bf16.msra.mxu0 %v770
          %782 = vmatmul.bf16.gmra.mxu0 %v547
          %v783 = vpop.f32.mrf.mxu0
          %v784 = vadd.f32 %v760, %v783
          %v785 = vpop.f32.mrf.mxu0
          %786 = vdwg.mxu0
          %v787 = vpack.c.bf16 %v784, %v784
          %s788 = scalar_lea.vmem %s459, 12 [#allocation2]
          %789 = vst.msk [vmem:[%s788] sm:$0xf] %vm563, %v787
          %s790 = scalar_lea.vmem %s8, 48
          %v791 = vld [vmem:[%s790] sm:$0xf]
          %v792 = vld [vmem:[%s790 + $0x4] sm:$0xf]
          %v793 = vld [vmem:[%s790 + $0x8] sm:$0xf]
          %v794 = vld [vmem:[%s790 + $0xc] sm:$0xf]
          %s795 = scalar_lea.vmem %s9, 3
          %v796 = vld [vmem:[%s795] sm:$0x1]
          %v798 = vperm.slane %v796, 0
          %v804 = vunpack.c.l.b16 %v791
          %v805 = vunpack.c.l.b16 %v792
          %v806 = vunpack.c.l.b16 %v793
          %v807 = vunpack.c.l.b16 %v794
          %v808 = vpack.c.b16 %v805, %v804
          %v809 = vpack.c.b16 %v807, %v806
          %812 = vmatpush.bf16.msra.mxu0 0
          %813 = vmatpush.bf16.msra.mxu0 0
          %814 = vmatpush.bf16.msra.mxu0 0
          %815 = vmatpush.bf16.msra.mxu0 0
          %816 = vmatpush.bf16.msra.mxu0 0
          %817 = vmatpush.bf16.msra.mxu0 0
          %818 = vmatpush.bf16.msra.mxu0 %v809
          %819 = vmatpush.bf16.msra.mxu0 %v808
          %820 = vmatmul.bf16.gmra.mxu0 %v547
          %v821 = vpop.f32.mrf.mxu0
          %v822 = vadd.f32 %v798, %v821
          %v823 = vpop.f32.mrf.mxu0
          %824 = vdwg.mxu0
          %v825 = vpack.c.bf16 %v822, %v822
          %s826 = scalar_lea.vmem %s466, 12 [#allocation4]
          %827 = vst.msk [vmem:[%s826] sm:$0xf] %vm563, %v825
        $region64: #{tpu_custom_call.1} parent=59 // pred_fallthru
          _
        %v828 = vld [vmem:[%s475] sm:$0xf]
        %v829 = vld [vmem:[%s475 + $0x4] sm:$0xf]
        %v830 = vld [vmem:[%s4] sm:$0xf]
        %v831 = vld [vmem:[%s4 + $0x4] sm:$0xf]
        %v832 = vld [vmem:[%s4 + $0x8] sm:$0xf]
        %v833 = vld [vmem:[%s4 + $0xc] sm:$0xf]
        %v834 = vld [vmem:[%s5] sm:$0x1]
        %v836 = vperm.slane %v834, 0
        %v840 = vunpack.c.l.b16 %v828
        %v841 = vunpack.c.l.b16 %v829
        %v842 = vpack.c.b16 %v841, %v840
        %v847 = vunpack.c.l.b16 %v830
        %v848 = vunpack.c.l.b16 %v831
        %v849 = vunpack.c.l.b16 %v832
        %v850 = vunpack.c.l.b16 %v833
        %v851 = vpack.c.b16 %v848, %v847
        %v852 = vpack.c.b16 %v850, %v849
        %vm855 = vcmask 261120
        %v857 = vsel %vm855, %v842, 0
        %859 = vmatpush.bf16.msra.mxu0 0
        %860 = vmatpush.bf16.msra.mxu0 0
        %861 = vmatpush.bf16.msra.mxu0 0
        %862 = vmatpush.bf16.msra.mxu0 0
        %863 = vmatpush.bf16.msra.mxu0 0
        %864 = vmatpush.bf16.msra.mxu0 0
        %865 = vmatpush.bf16.msra.mxu0 %v852
        %866 = vmatpush.bf16.msra.mxu0 %v851
        %867 = vmatmul.bf16.gmra.mxu0 %v857
        %v868 = vpop.f32.mrf.mxu0
        %v869 = vadd.f32 %v836, %v868
        %v870 = vpop.f32.mrf.mxu0
        %v871 = vadd.f32 %v836, %v870
        %872 = vdwg.mxu0
        %v873 = vmul.f32 %v869, 0.35355338
        %v874 = vmul.f32 %v871, 0.35355338
        %v875 = vpack.c.bf16 %v873, %v873
        %v876 = vpack.c.bf16 %v874, %v874
        %vm877 = vcmask 60416
        %878 = vst.msk [vmem:[%s489] sm:$0xf] %vm877, %v875
        %879 = vst.msk [vmem:[%s489 + $0x4] sm:$0xf] %vm877, %v876
        %s880 = scalar_lea.vmem %s4, 16
        %v881 = vld [vmem:[%s880] sm:$0xf]
        %v882 = vld [vmem:[%s880 + $0x4] sm:$0xf]
        %v883 = vld [vmem:[%s880 + $0x8] sm:$0xf]
        %v884 = vld [vmem:[%s880 + $0xc] sm:$0xf]
        %s885 = scalar_lea.vmem %s5, 1
        %v886 = vld [vmem:[%s885] sm:$0x1]
        %v888 = vperm.slane %v886, 0
        %v894 = vunpack.c.l.b16 %v881
        %v895 = vunpack.c.l.b16 %v882
        %v896 = vunpack.c.l.b16 %v883
        %v897 = vunpack.c.l.b16 %v884
        %v898 = vpack.c.b16 %v895, %v894
        %v899 = vpack.c.b16 %v897, %v896
        %902 = vmatpush.bf16.msra.mxu0 0
        %903 = vmatpush.bf16.msra.mxu0 0
        %904 = vmatpush.bf16.msra.mxu0 0
        %905 = vmatpush.bf16.msra.mxu0 0
        %906 = vmatpush.bf16.msra.mxu0 0
        %907 = vmatpush.bf16.msra.mxu0 0
        %908 = vmatpush.bf16.msra.mxu0 %v899
        %909 = vmatpush.bf16.msra.mxu0 %v898
        %910 = vmatmul.bf16.gmra.mxu0 %v857
        %v911 = vpop.f32.mrf.mxu0
        %v912 = vadd.f32 %v888, %v911
        %v913 = vpop.f32.mrf.mxu0
        %v914 = vadd.f32 %v888, %v913
        %915 = vdwg.mxu0
        %v916 = vmul.f32 %v912, 0.35355338
        %v917 = vmul.f32 %v914, 0.35355338
        %v918 = vpack.c.bf16 %v916, %v916
        %v919 = vpack.c.bf16 %v917, %v917
        %s920 = scalar_lea.vmem %s489, 8
        %921 = vst.msk [vmem:[%s920] sm:$0xf] %vm877, %v918
        %922 = vst.msk [vmem:[%s920 + $0x4] sm:$0xf] %vm877, %v919
        %s923 = scalar_lea.vmem %s4, 32
        %v924 = vld [vmem:[%s923] sm:$0xf]
        %v925 = vld [vmem:[%s923 + $0x4] sm:$0xf]
        %v926 = vld [vmem:[%s923 + $0x8] sm:$0xf]
        %v927 = vld [vmem:[%s923 + $0xc] sm:$0xf]
        %s928 = scalar_lea.vmem %s5, 2
        %v929 = vld [vmem:[%s928] sm:$0x1]
        %v931 = vperm.slane %v929, 0
        %v937 = vunpack.c.l.b16 %v924
        %v938 = vunpack.c.l.b16 %v925
        %v939 = vunpack.c.l.b16 %v926
        %v940 = vunpack.c.l.b16 %v927
        %v941 = vpack.c.b16 %v938, %v937
        %v942 = vpack.c.b16 %v940, %v939
        %945 = vmatpush.bf16.msra.mxu0 0
        %946 = vmatpush.bf16.msra.mxu0 0
        %947 = vmatpush.bf16.msra.mxu0 0
        %948 = vmatpush.bf16.msra.mxu0 0
        %949 = vmatpush.bf16.msra.mxu0 0
        %950 = vmatpush.bf16.msra.mxu0 0
        %951 = vmatpush.bf16.msra.mxu0 %v942
        %952 = vmatpush.bf16.msra.mxu0 %v941
        %953 = vmatmul.bf16.gmra.mxu0 %v857
        %v954 = vpop.f32.mrf.mxu0
        %v955 = vadd.f32 %v931, %v954
        %v956 = vpop.f32.mrf.mxu0
        %v957 = vadd.f32 %v931, %v956
        %958 = vdwg.mxu0
        %v959 = vmul.f32 %v955, 0.35355338
        %v960 = vmul.f32 %v957, 0.35355338
        %v961 = vpack.c.bf16 %v959, %v959
        %v962 = vpack.c.bf16 %v960, %v960
        %s963 = scalar_lea.vmem %s489, 16
        %964 = vst.msk [vmem:[%s963] sm:$0xf] %vm877, %v961
        %965 = vst.msk [vmem:[%s963 + $0x4] sm:$0xf] %vm877, %v962
        %s966 = scalar_lea.vmem %s4, 48
        %v967 = vld [vmem:[%s966] sm:$0xf]
        %v968 = vld [vmem:[%s966 + $0x4] sm:$0xf]
        %v969 = vld [vmem:[%s966 + $0x8] sm:$0xf]
        %v970 = vld [vmem:[%s966 + $0xc] sm:$0xf]
        %s971 = scalar_lea.vmem %s5, 3
        %v972 = vld [vmem:[%s971] sm:$0x1]
        %v974 = vperm.slane %v972, 0
        %v980 = vunpack.c.l.b16 %v967
        %v981 = vunpack.c.l.b16 %v968
        %v982 = vunpack.c.l.b16 %v969
        %v983 = vunpack.c.l.b16 %v970
        %v984 = vpack.c.b16 %v981, %v980
        %v985 = vpack.c.b16 %v983, %v982
        %988 = vmatpush.bf16.msra.mxu0 0
        %989 = vmatpush.bf16.msra.mxu0 0
        %990 = vmatpush.bf16.msra.mxu0 0
        %991 = vmatpush.bf16.msra.mxu0 0
        %992 = vmatpush.bf16.msra.mxu0 0
        %993 = vmatpush.bf16.msra.mxu0 0
        %994 = vmatpush.bf16.msra.mxu0 %v985
        %995 = vmatpush.bf16.msra.mxu0 %v984
        %996 = vmatmul.bf16.gmra.mxu0 %v857
        %v997 = vpop.f32.mrf.mxu0
        %v998 = vadd.f32 %v974, %v997
        %v999 = vpop.f32.mrf.mxu0
        %v1000 = vadd.f32 %v974, %v999
        %1001 = vdwg.mxu0
        %v1002 = vmul.f32 %v998, 0.35355338
        %v1003 = vmul.f32 %v1000, 0.35355338
        %v1004 = vpack.c.bf16 %v1002, %v1002
        %v1005 = vpack.c.bf16 %v1003, %v1003
        %s1006 = scalar_lea.vmem %s489, 24
        %1007 = vst.msk [vmem:[%s1006] sm:$0xf] %vm877, %v1004
        %1008 = vst.msk [vmem:[%s1006 + $0x4] sm:$0xf] %vm877, %v1005
        %s1009 = smul.u32 2, %s35
        %p1010 = scmp.lt.s32.totalorder %s34, 1
        %s1011 = scalar_select %p1010, %s34, 1
        %p1012 = scmp.lt.s32.totalorder %s1009, 1
        %s1013 = scalar_select %p1012, %s1009, 1
        %s1014 = smul.addr %s1011, 8
        %s1015 = sadd.s32 %s1013, %s1014
        %s1016 = smul.addr %s1015, 4
        %s1017 = scalar_lea.vmem %s10, %s1016
        %s1018 = sand.u32 %s300, 1
        %s1019 = scalar_lea.sflag [#allocation3], %s1018
        %s1020 = sand.u32 %s300, 1
        %s1021 = smul.addr %s1020, 16
        %s1022 = scalar_lea.vmem [#allocation2], %s1021
        %s1023 = sand.u32 %s326, 1
        %s1024 = scalar_lea.sflag [#allocation5], %s1023
        %s1025 = sand.u32 %s326, 1
        %s1026 = smul.addr %s1025, 16
        %s1027 = scalar_lea.vmem [#allocation4], %s1026
        // Predicated region
        $region65: #{tpu_custom_call.1} parent=59 // pred_check
          %p1028 = pneg %p284
        $region66: #{tpu_custom_call.1} parent=59 // pred_check_branch
          %1030 = sbr.rel (%p1028) target = $region68
        $region67: #{tpu_custom_call.1} parent=59 // pred_region
          %s1031 = smul.u32 2, %s35
        $region68: #{tpu_custom_call.1} parent=59 // pred_fallthru
          _
        // Predicated region
        $region69: #{tpu_custom_call.1} parent=59 // pred_check
          %p1032 = pneg %p310
        $region70: #{tpu_custom_call.1} parent=59 // pred_check_branch
          %1034 = sbr.rel (%p1032) target = $region72
        $region71: #{tpu_custom_call.1} parent=59 // pred_region
          %1036 = vsyncadd %s1019, 0
          %s1037 = smul.addr %s34, 4
          %s1038 = smul.addr %s1037, 4
          %s1039 = scalar_lea.hbm %s11, %s1038
          %s1040 = sshll.u32 %s1022, 4
          %s1041 = int_to_ptr.vmem [resolvable:$true] %s1040
          %s1042 = sshll.u32 %s1039, 4
          %s1043 = int_to_ptr.hbm [resolvable:$true] %s1042
          %1048 = dma.vmem_to_hbm [thread:$0]  %s1041, 256, %s1043, %s1019, 64, 64, 4
        $region72: #{tpu_custom_call.1} parent=59 // pred_fallthru
          _
        // Predicated region
        $region73: #{tpu_custom_call.1} parent=59 // pred_check
          %p1049 = pneg %p336
        $region74: #{tpu_custom_call.1} parent=59 // pred_check_branch
          %1051 = sbr.rel (%p1049) target = $region76
        $region75: #{tpu_custom_call.1} parent=59 // pred_region
          %1053 = vsyncadd %s1024, 0
          %s1054 = smul.addr %s34, 4
          %s1055 = smul.addr %s1054, 4
          %s1056 = scalar_lea.hbm %s12, %s1055
          %s1057 = sshll.u32 %s1027, 4
          %s1058 = int_to_ptr.vmem [resolvable:$true] %s1057
          %s1059 = sshll.u32 %s1056, 4
          %s1060 = int_to_ptr.hbm [resolvable:$true] %s1059
          %1065 = dma.vmem_to_hbm [thread:$0]  %s1058, 256, %s1060, %s1024, 64, 64, 4
        $region76: #{tpu_custom_call.1} parent=59 // pred_fallthru
          _
      $region60: #{tpu_custom_call.1} parent=5 // pred_fallthru
        _
      %p1066 = scmp.le.s32.totalorder 2, %s25
      // Predicated region
      $region77: #{tpu_custom_call.1} parent=5 // pred_check
        %p1067 = pneg %p1066
      $region78: #{tpu_custom_call.1} parent=5 // pred_check_branch
        %1069 = sbr.rel (%p1067) target = $region80
      $region79: #{tpu_custom_call.1} parent=5 // pred_region
        %s1070 = ssub.s32 %s25, 2
        // Predicated region
        $region81: #{tpu_custom_call.1} parent=79 // pred_check
          %p1071 = pneg %p290
        $region82: #{tpu_custom_call.1} parent=79 // pred_check_branch
          %1073 = sbr.rel (%p1071) target = $region84
        $region83: #{tpu_custom_call.1} parent=79 // pred_region
          %s1074 = smul.u32 2, %s37
          %p1075 = scmp.lt.s32.totalorder %s36, 1
          %s1076 = scalar_select %p1075, %s36, 1
          %p1077 = scmp.lt.s32.totalorder %s1074, 1
          %s1078 = scalar_select %p1077, %s1074, 1
          %s1079 = smul.addr %s1076, 8
          %s1080 = sadd.s32 %s1078, %s1079
          %s1081 = smul.addr %s1080, 4
          %s1082 = scalar_lea.vmem %s10, %s1081
        $region84: #{tpu_custom_call.1} parent=79 // pred_fallthru
          _
        // Predicated region
        $region85: #{tpu_custom_call.1} parent=79 // pred_check
          %p1083 = pneg %p316
        $region86: #{tpu_custom_call.1} parent=79 // pred_check_branch
          %1085 = sbr.rel (%p1083) target = $region88
        $region87: #{tpu_custom_call.1} parent=79 // pred_region
          %s1086 = sand.u32 %s301, 1
          %s1087 = scalar_lea.sflag [#allocation3], %s1086
          %s1088 = sand.u32 %s301, 1
          %s1089 = smul.addr %s1088, 16
          %s1090 = scalar_lea.vmem [#allocation2], %s1089
          %1092 = dma.done %s1087, 256
        $region88: #{tpu_custom_call.1} parent=79 // pred_fallthru
          _
        // Predicated region
        $region89: #{tpu_custom_call.1} parent=79 // pred_check
          %p1093 = pneg %p342
        $region90: #{tpu_custom_call.1} parent=79 // pred_check_branch
          %1095 = sbr.rel (%p1093) target = $region92
        $region91: #{tpu_custom_call.1} parent=79 // pred_region
          %s1096 = sand.u32 %s327, 1
          %s1097 = scalar_lea.sflag [#allocation5], %s1096
          %s1098 = sand.u32 %s327, 1
          %s1099 = smul.addr %s1098, 16
          %s1100 = scalar_lea.vmem [#allocation4], %s1099
          %1102 = dma.done %s1097, 256
        $region92: #{tpu_custom_call.1} parent=79 // pred_fallthru
          _
      $region80: #{tpu_custom_call.1} parent=5 // pred_fallthru
        _
    $region6: #{tpu_custom_call.1} parent=1 // loop_footer
      %s29 = sadd.s32 1, %s25
    $region7: #{tpu_custom_call.1} parent=1 // loop_footer_branch
      %24 = sbr.rel target = $region3
    $region8: #{tpu_custom_call.1} parent=1 // loop_exit
      _
    %1103 = vsyncpa [#allocation3], 1
    %s1104 = scalar_lea.sflag [#allocation3], 1
    %1105 = vsyncpa %s1104, 1
    %1106 = vsyncpa [#allocation5], 1
    %s1107 = scalar_lea.sflag [#allocation5], 1
    %1108 = vsyncpa %s1107, 1

</llo_original>
